<compile_context>
chip_gen: v5e
topology: v5e:2x2
jax: 0.10.0
libtpu: 0.0.40
codegen_flags: <defaults>
</compile_context>

<pallas_src>
import functools
import math

import jax
import jax.numpy as jnp
from jax import lax
from jax.experimental import pallas as pl
from jax.experimental.pallas import tpu as pltpu


# ----------------------------- hardware-aware knobs -----------------------------

@functools.lru_cache(maxsize=None)
def _vmem_limit_bytes():
    """Generation-aware VMEM limit: tight on v7x (64 MiB/TC), generous on v5e/v6e."""
    try:
        info = pltpu.get_tpu_info()
        cap = getattr(info, "vmem_capacity_bytes", None)
        if cap is None:
            return 48 * 1024 * 1024
    except Exception:
        return 48 * 1024 * 1024
    if cap <= 64 * 1024 * 1024:
        return 40 * 1024 * 1024      # v7x: leave headroom for Mosaic internal scratch
    return 96 * 1024 * 1024          # v5e / v6e: 128 MiB physical


@functools.lru_cache(maxsize=None)
def _resident_weight_mode():
    """pipeline_mode for constant-index (weight) blocks: single-buffer if supported."""
    try:
        mode = pl.Buffered(1)

        def _probe(w_ref, o_ref):
            o_ref[...] = w_ref[...] + 1.0

        f = pl.pallas_call(
            _probe,
            out_shape=jax.ShapeDtypeStruct((8, 128), jnp.float32),
            grid=(2,),
            in_specs=[pl.BlockSpec((8, 128), lambda i: (0, 0), pipeline_mode=mode)],
            out_specs=pl.BlockSpec((8, 128), lambda i: (0, 0)),
        )
        jax.block_until_ready(f(jnp.zeros((8, 128), jnp.float32)))
        return mode
    except Exception:
        return None


def _weight_spec(a):
    """Whole-array, constant-index BlockSpec for a weight; single-buffered if possible."""
    nd = a.ndim
    mode = _resident_weight_mode()
    if mode is None:
        return pl.BlockSpec(a.shape, lambda *_, _nd=nd: (0,) * _nd)
    return pl.BlockSpec(a.shape, lambda *_, _nd=nd: (0,) * _nd, pipeline_mode=mode)


def _choose_tile(n, candidates):
    """Pick a tile from `candidates` (descending). Returns (tile, n_padded).

    Prefers the largest candidate dividing n; otherwise pads n up to a multiple of the
    largest candidate <= n so the grid never degenerates to one whole-array block.
    """
    for c in candidates:
        if n % c == 0:
            return c, n
    for c in candidates:
        if c <= n:
            return c, c * pl.cdiv(n, c)
    c = candidates[-1]
    return c, c * pl.cdiv(n, c)


# ----------------------------- small in-kernel helpers -----------------------------

def _layernorm(x, w, b, eps=1e-5):
    # x: (R, C) f32; w, b: (1, C) f32.  Matches torch.nn.LayerNorm (biased variance).
    mu = jnp.mean(x, axis=-1, keepdims=True)
    var = jnp.mean((x - mu) ** 2, axis=-1, keepdims=True)
    return (x - mu) * lax.rsqrt(var + eps) * w + b


# ----------------------- kernel 1: LN1 + Q/K/V projection -----------------------

def qkv_kernel(x_ref, ln1_w, ln1_b, w_q, w_k, w_v, b_q, b_k, b_v,
               q_ref, k_ref, v_ref, *, scale):
    xn = _layernorm(x_ref[...], ln1_w[...], ln1_b[...]).astype(jnp.bfloat16)
    q = jnp.dot(xn, w_q[...], preferred_element_type=jnp.float32) + b_q[...]
    k = jnp.dot(xn, w_k[...], preferred_element_type=jnp.float32) + b_k[...]
    v = jnp.dot(xn, w_v[...], preferred_element_type=jnp.float32) + b_v[...]
    q_ref[...] = (q * scale).astype(q_ref.dtype)   # fold 1/sqrt(hd) into q
    k_ref[...] = k.astype(k_ref.dtype)
    v_ref[...] = v.astype(v_ref.dtype)


def apply_qkv(x, blk, n_head, t_seq):
    # TODO(synk): for very large C, tile the Q/K/V output dim instead of keeping each
    # (C, C) projection fully resident.
    B, T_pad, C = x.shape
    scale = 1.0 / math.sqrt(C // n_head)
    weights = [blk["ln1_w"], blk["ln1_b"], blk["w_q"], blk["w_k"], blk["w_v"],
               blk["b_q"], blk["b_k"], blk["b_v"]]
    row_spec = pl.BlockSpec((None, t_seq, C), lambda b, i: (b, i, 0))
    out_shape = jax.ShapeDtypeStruct((B, T_pad, C), jnp.bfloat16)
    return pl.pallas_call(
        functools.partial(qkv_kernel, scale=scale),
        out_shape=(out_shape, out_shape, out_shape),
        grid=(B, T_pad // t_seq),
        in_specs=[row_spec] + [_weight_spec(w) for w in weights],
        out_specs=(row_spec, row_spec, row_spec),
        compiler_params=pltpu.CompilerParams(
            dimension_semantics=("parallel", "parallel"),
            vmem_limit_bytes=_vmem_limit_bytes()),
    )(x, *weights)


# -------------------- kernel 2: flash causal attention (online softmax) --------------------

def flash_kernel(q_ref, k_ref, v_ref, o_ref, m_sc, l_sc, acc_sc, *, n_head):
    qi = pl.program_id(1)
    ki = pl.program_id(2)
    t_q, C = q_ref.shape
    t_kv = k_ref.shape[0]
    hd = C // n_head

    @pl.when(ki == 0)
    def _():
        m_sc[...] = jnp.full(m_sc.shape, -jnp.inf, m_sc.dtype)
        l_sc[...] = jnp.zeros(l_sc.shape, l_sc.dtype)
        acc_sc[...] = jnp.zeros(acc_sc.shape, acc_sc.dtype)

    # Skip KV tiles that lie entirely in the causal future of this query tile.
    @pl.when(ki * t_kv <= qi * t_q + (t_q - 1))
    def _():
        qh = q_ref[...].reshape(t_q, n_head, hd)
        kh = k_ref[...].reshape(t_kv, n_head, hd)
        vh = v_ref[...].reshape(t_kv, n_head, hd)

        # All heads in one batched contraction -> (H, TQ, TKV) scores for this tile pair.
        s = jnp.einsum('qhd,khd->hqk', qh, kh, preferred_element_type=jnp.float32)

        q_idx = qi * t_q + lax.broadcasted_iota(jnp.int32, (t_q, t_kv), 0)
        k_idx = ki * t_kv + lax.broadcasted_iota(jnp.int32, (t_q, t_kv), 1)
        s = jnp.where((k_idx <= q_idx)[None, :, :], s, -1e30)  # finite mask (no NaN risk)

        m_prev = m_sc[...]
        m_new = jnp.maximum(m_prev, jnp.max(s, axis=-1, keepdims=True))
        alpha = jnp.exp(m_prev - m_new)
        p = jnp.exp(s - m_new)
        l_sc[...] = alpha * l_sc[...] + jnp.sum(p, axis=-1, keepdims=True)
        acc_sc[...] = alpha * acc_sc[...] + jnp.einsum(
            'hqk,khd->hqd', p.astype(jnp.bfloat16), vh,
            preferred_element_type=jnp.float32)
        m_sc[...] = m_new

    @pl.when(ki == pl.num_programs(2) - 1)
    def _():
        o = acc_sc[...] * pl.reciprocal(l_sc[...], approx=True)     # (H, TQ, hd), EUP recip
        o = jnp.transpose(o, (1, 0, 2)).reshape(t_q, C)
        o_ref[...] = o.astype(o_ref.dtype)


def flash_attention(q, k, v, n_head, t_q, t_kv):
    B, T_pad, C = q.shape
    hd = C // n_head
    q_spec = pl.BlockSpec((None, t_q, C), lambda b, qi, ki: (b, qi, 0))
    kv_spec = pl.BlockSpec((None, t_kv, C), lambda b, qi, ki: (b, ki, 0))
    return pl.pallas_call(
        functools.partial(flash_kernel, n_head=n_head),
        out_shape=jax.ShapeDtypeStruct((B, T_pad, C), jnp.bfloat16),
        grid=(B, T_pad // t_q, T_pad // t_kv),
        in_specs=[q_spec, kv_spec, kv_spec],
        out_specs=q_spec,
        scratch_shapes=[
            pltpu.VMEM((n_head, t_q, 1), jnp.float32),
            pltpu.VMEM((n_head, t_q, 1), jnp.float32),
            pltpu.VMEM((n_head, t_q, hd), jnp.float32),
        ],
        compiler_params=pltpu.CompilerParams(
            dimension_semantics=("parallel", "parallel", "arbitrary"),
            vmem_limit_bytes=_vmem_limit_bytes()),
    )(q, k, v)


# --------- kernel 3: attn out-projection + residual + LN2 + hidden-tiled MLP ---------

def post_attn_mlp_kernel(x_ref, o_ref, w_ap, b_ap, ln2_w, ln2_b,
                         w_fc, b_fc, w_mp, b_mp, y_ref, acc_sc, xn_sc):
    hi = pl.program_id(2)

    @pl.when(hi == 0)
    def _():
        attn = jnp.dot(o_ref[...], w_ap[...],
                       preferred_element_type=jnp.float32) + b_ap[...]
        x1 = x_ref[...] + attn                  # residual after attention
        acc_sc[...] = x1                        # MLP residual accumulator starts at x1
        xn_sc[...] = _layernorm(x1, ln2_w[...], ln2_b[...]).astype(jnp.bfloat16)

    h = jnp.dot(xn_sc[...], w_fc[...], preferred_element_type=jnp.float32) + b_fc[...]
    # TODO(synk): PyTorch nn.GELU() default is erf-based; tanh approximation used here.
    h = jax.nn.gelu(h, approximate=True)
    acc_sc[...] += jnp.dot(h.astype(jnp.bfloat16), w_mp[...],
                           preferred_element_type=jnp.float32)

    @pl.when(hi == pl.num_programs(2) - 1)
    def _():
        y_ref[...] = acc_sc[...] + b_mp[...]


def apply_post_attn_mlp(x, o, blk, t_seq):
    B, T_pad, C = x.shape
    w_fc, b_fc, w_mp = blk["w_fc"], blk["b_fc"], blk["w_mp"]
    H4 = w_fc.shape[1]
    tile_h, H4_pad = _choose_tile(H4, (1024, 512, 256, 128))
    if H4_pad != H4:
        w_fc = jnp.pad(w_fc, ((0, 0), (0, H4_pad - H4)))
        b_fc = jnp.pad(b_fc, ((0, 0), (0, H4_pad - H4)))
        w_mp = jnp.pad(w_mp, ((0, H4_pad - H4), (0, 0)))

    row_spec = pl.BlockSpec((None, t_seq, C), lambda b, i, h: (b, i, 0))
    in_specs = [
        row_spec,                                               # x (f32 residual)
        row_spec,                                               # o (bf16 attention out)
        _weight_spec(blk["w_ap"]),
        _weight_spec(blk["b_ap"]),
        _weight_spec(blk["ln2_w"]),
        _weight_spec(blk["ln2_b"]),
        pl.BlockSpec((C, tile_h), lambda b, i, h: (0, h)),      # w_fc hidden tile
        pl.BlockSpec((1, tile_h), lambda b, i, h: (0, h)),      # b_fc hidden tile
        pl.BlockSpec((tile_h, C), lambda b, i, h: (h, 0)),      # w_mp hidden tile
        _weight_spec(blk["b_mp"]),
    ]
    return pl.pallas_call(
        post_attn_mlp_kernel,
        out_shape=jax.ShapeDtypeStruct((B, T_pad, C), jnp.float32),
        grid=(B, T_pad // t_seq, H4_pad // tile_h),
        in_specs=in_specs,
        out_specs=row_spec,
        scratch_shapes=[pltpu.VMEM((t_seq, C), jnp.float32),
                        pltpu.VMEM((t_seq, C), jnp.bfloat16)],
        compiler_params=pltpu.CompilerParams(
            dimension_semantics=("parallel", "parallel", "arbitrary"),
            vmem_limit_bytes=_vmem_limit_bytes()),
    )(x, o, blk["w_ap"], blk["b_ap"], blk["ln2_w"], blk["ln2_b"],
      w_fc, b_fc, w_mp, blk["b_mp"])


# ---------- kernel 4: LN_f + vocab-tiled lm_head + fused cross-entropy stats ----------

def head_kernel(x_ref, tgt_ref, lnf_w, lnf_b, w_lm, logits_ref, nll_ref,
                m_sc, l_sc, t_sc, *, vocab_size):
    vi = pl.program_id(1)
    tile_v = w_lm.shape[1]

    @pl.when(vi == 0)
    def _():
        m_sc[...] = jnp.full(m_sc.shape, -jnp.inf, m_sc.dtype)
        l_sc[...] = jnp.zeros(l_sc.shape, l_sc.dtype)
        t_sc[...] = jnp.zeros(t_sc.shape, t_sc.dtype)

    xn = _layernorm(x_ref[...], lnf_w[...], lnf_b[...]).astype(jnp.bfloat16)
    logits = jnp.dot(xn, w_lm[...], preferred_element_type=jnp.float32)

    col = vi * tile_v + lax.broadcasted_iota(jnp.int32, logits.shape, 1)
    logits = jnp.where(col < vocab_size, logits, -1e30)   # mask padded vocab columns
    logits_ref[...] = logits

    # online logsumexp across vocab tiles
    m_prev = m_sc[...]
    m_new = jnp.maximum(m_prev, jnp.max(logits, axis=-1, keepdims=True))
    alpha = jnp.exp(m_prev - m_new)
    l_sc[...] = alpha * l_sc[...] + jnp.sum(jnp.exp(logits - m_new), axis=-1, keepdims=True)
    m_sc[...] = m_new

    # gather target logit via one-hot compare (targets pre-clamped to [0, V-1])
    onehot = (col == tgt_ref[...]).astype(jnp.float32)
    t_sc[...] += jnp.sum(logits * onehot, axis=-1, keepdims=True)

    @pl.when(vi == pl.num_programs(1) - 1)
    def _():
        nll_ref[...] = m_sc[...] + jnp.log(l_sc[...]) - t_sc[...]


def apply_head(x, params, targets, vocab_size):
    B, T_pad, C = x.shape
    rows = B * T_pad
    x2 = x.reshape(rows, C)

    V = vocab_size
    V_pad = 128 * pl.cdiv(V, 128)
    w_lm = params["w_lm"]
    if w_lm.shape[1] != V_pad:
        w_lm = jnp.pad(w_lm, ((0, 0), (0, V_pad - w_lm.shape[1])))

    if targets is None:
        tgt2 = jnp.zeros((rows, 1), jnp.int32)
    else:
        t = targets.astype(jnp.int32)
        if t.shape[1] != T_pad:
            t = jnp.pad(t, ((0, 0), (0, T_pad - t.shape[1])))
        tgt2 = jnp.clip(t, 0, V - 1).reshape(rows, 1)

    tile_r, _ = _choose_tile(rows, (256, 128, 64, 32, 16, 8))
    tile_v, _ = _choose_tile(V_pad, (1024, 512, 256, 128))
    grid = (rows // tile_r, V_pad // tile_v)

    in_specs = [
        pl.BlockSpec((tile_r, C), lambda r, v: (r, 0)),
        pl.BlockSpec((tile_r, 1), lambda r, v: (r, 0)),
        _weight_spec(params["lnf_w"]),
        _weight_spec(params["lnf_b"]),
        pl.BlockSpec((C, tile_v), lambda r, v: (0, v)),
    ]
    out_specs = (
        pl.BlockSpec((tile_r, tile_v), lambda r, v: (r, v)),     # logits (lane-dense)
        pl.BlockSpec((tile_r, 1), lambda r, v: (r, 0)),          # per-row NLL
    )
    out_shape = (
        jax.ShapeDtypeStruct((rows, V_pad), jnp.float32),
        jax.ShapeDtypeStruct((rows, 1), jnp.float32),
    )
    logits, nll = pl.pallas_call(
        functools.partial(head_kernel, vocab_size=V),
        out_shape=out_shape,
        grid=grid,
        in_specs=in_specs,
        out_specs=out_specs,
        scratch_shapes=[pltpu.VMEM((tile_r, 1), jnp.float32)] * 3,
        compiler_params=pltpu.CompilerParams(
            dimension_semantics=("parallel", "arbitrary"),
            vmem_limit_bytes=_vmem_limit_bytes()),
    )(x2, tgt2, params["lnf_w"], params["lnf_b"], w_lm)
    return logits, nll, V_pad


# ------------------------------- parameter init -------------------------------

def init_params(key, vocab_size, block_size, n_embd, n_layer, n_head):
    del n_head  # head count only affects kernel math, not parameter shapes
    std = 0.02
    proj_std = 0.02 / math.sqrt(2 * n_layer)
    keys = iter(jax.random.split(key, 3 + 6 * n_layer))

    def nrm(shape, s=std, dtype=jnp.float32):
        return (s * jax.random.normal(next(keys), shape)).astype(dtype)

    C = n_embd
    ones = lambda shp: jnp.ones(shp, jnp.float32)
    zeros = lambda shp: jnp.zeros(shp, jnp.float32)

    # Matmul weights stored pre-transposed as (in, out) in bf16 for the MXU.
    params = {
        "wte": nrm((vocab_size, C)),
        "wpe": nrm((block_size, C)),
        "lnf_w": ones((1, C)),
        "lnf_b": zeros((1, C)),
        "w_lm": nrm((C, vocab_size), dtype=jnp.bfloat16),
        "blocks": [],
    }
    for _ in range(n_layer):
        params["blocks"].append({
            "ln1_w": ones((1, C)), "ln1_b": zeros((1, C)),
            "w_q": nrm((C, C), dtype=jnp.bfloat16),
            "w_k": nrm((C, C), dtype=jnp.bfloat16),
            "w_v": nrm((C, C), dtype=jnp.bfloat16),
            "b_q": zeros((1, C)), "b_k": zeros((1, C)), "b_v": zeros((1, C)),
            "w_ap": nrm((C, C), proj_std, dtype=jnp.bfloat16), "b_ap": zeros((1, C)),
            "ln2_w": ones((1, C)), "ln2_b": zeros((1, C)),
            "w_fc": nrm((C, 4 * C), dtype=jnp.bfloat16), "b_fc": zeros((1, 4 * C)),
            "w_mp": nrm((4 * C, C), proj_std, dtype=jnp.bfloat16), "b_mp": zeros((1, C)),
        })
    return params


# ---------------------------------- forward ----------------------------------

def gpt_forward(idx, params, n_head, targets=None):
    B, T = idx.shape
    V, C = params["wte"].shape
    assert T <= params["wpe"].shape[0], "sequence longer than block_size"

    tok = jnp.take(params["wte"], idx, axis=0)          # (B, T, C) embedding gather (glue)
    pos = params["wpe"][:T][None, :, :]
    x = (tok + pos).astype(jnp.float32)

    # seq tile (multiple of 16 for bf16 sublane packing); pad T if needed
    t_seq, T_pad = _choose_tile(T, (256, 128, 64, 32, 16))
    if T_pad != T:
        x = jnp.pad(x, ((0, 0), (0, T_pad - T), (0, 0)))

    # TODO(synk): residual stream kept f32 between kernels; bf16 residual (or full
    # attn+MLP single-kernel fusion) would further cut HBM traffic on v5e/v6e.
    for blk in params["blocks"]:
        q, k, v = apply_qkv(x, blk, n_head, t_seq)
        o = flash_attention(q, k, v, n_head, t_seq, t_seq)
        x = apply_post_attn_mlp(x, o, blk, t_seq)

    logits_p, nll_p, V_pad = apply_head(x, params, targets, V)

    logits = logits_p.reshape(B, T_pad, V_pad)
    if T_pad != T or V_pad != V:
        logits = logits[:, :T, :V]

    loss = None
    if targets is not None:
        nll = nll_p.reshape(B, T_pad)[:, :T]
        tgt = targets.astype(jnp.int32)
        valid = (tgt >= 0).astype(jnp.float32)            # negative targets ignored
        loss = jnp.sum(nll * valid) / jnp.maximum(jnp.sum(valid), 1.0)
    return logits, loss


# ------------------------------------ main ------------------------------------

if __name__ == "__main__":
    # Small config consistent with the GPT module
    vocab_size = 256
    block_size = 16
    n_embd = 128
    n_layer = 2
    n_head = 4
    B, T = 2, 8

    key = jax.random.PRNGKey(0)
    pkey, ikey, tkey = jax.random.split(key, 3)
    params = init_params(pkey, vocab_size, block_size, n_embd, n_layer, n_head)

    idx = jax.random.randint(ikey, (B, T), 0, vocab_size, dtype=jnp.int32)
    targets = jax.random.randint(tkey, (B, T), 0, vocab_size, dtype=jnp.int32)

    logits, loss = gpt_forward(idx, params, n_head, targets=targets)
    logits = jax.block_until_ready(logits)
    loss = jax.block_until_ready(loss)

    assert logits.shape == (B, T, vocab_size)
    assert bool(jnp.isfinite(loss))
    print("KERNEL_OK")
</pallas_src>

<mosaic_0001>
module attributes {stable_mosaic.version = 11 : i64} {
  func.func @_probe(%arg0: i32, %arg1: memref<8x128xf32, #tpu.memory_space<vmem>>, %arg2: memref<8x128xf32, #tpu.memory_space<vmem>>) attributes {dimension_semantics = [#tpu.dimension_semantics<arbitrary>], iteration_bounds = array<i64: 2>, scalar_prefetch = 0 : i64, scratch_operands = 0 : i64, tpu.core_type = #tpu.core_type<tc>, window_params = [{pipeline_mode = #tpu.pipeline_mode<synchronous>, transform_indices = @transform_0, window_bounds = array<i64: 8, 128>}, {pipeline_mode = #tpu.pipeline_mode<synchronous>, transform_indices = @transform_1, window_bounds = array<i64: 8, 128>}]} {
    %c0 = arith.constant 0 : index
    %c0_0 = arith.constant 0 : index
    %0 = vector.load %arg1[%c0, %c0_0] : memref<8x128xf32, #tpu.memory_space<vmem>>, vector<8x128xf32>
    %cst = arith.constant 1.000000e+00 : f32
    %1 = vector.broadcast %cst : f32 to vector<8x128xf32>
    %2 = arith.addf %0, %1 : vector<8x128xf32>
    %c0_1 = arith.constant 0 : index
    %c0_2 = arith.constant 0 : index
    %3 = vector.load %arg2[%c0_1, %c0_2] : memref<8x128xf32, #tpu.memory_space<vmem>>, vector<8x128xf32>
    tpu.vector_store %arg2[%c0_1, %c0_2], %2 {strides = array<i32>} : memref<8x128xf32, #tpu.memory_space<vmem>>, vector<8x128xf32>,
    return
  }
  func.func @transform_0(%arg0: i32) -> (i32, i32) {
    %c0_i32 = arith.constant 0 : i32
    %c0_i32_0 = arith.constant 0 : i32
    %c0_i32_1 = arith.constant 0 : i32
    return %c0_i32, %c0_i32_0 : i32, i32
  }
  func.func @transform_1(%arg0: i32) -> (i32, i32) {
    %c0_i32 = arith.constant 0 : i32
    %c0_i32_0 = arith.constant 0 : i32
    %c0_i32_1 = arith.constant 0 : i32
    return %c0_i32, %c0_i32_0 : i32, i32
  }
}

module attributes {stable_mosaic.version = 11 : i64} {
  func.func @qkv_kernel(%arg0: i32, %arg1: i32, %arg2: memref<1x16x128xf32, #tpu.memory_space<vmem>>, %arg3: memref<1x128xf32, #tpu.memory_space<vmem>>, %arg4: memref<1x128xf32, #tpu.memory_space<vmem>>, %arg5: memref<128x128xbf16, #tpu.memory_space<vmem>>, %arg6: memref<128x128xbf16, #tpu.memory_space<vmem>>, %arg7: memref<128x128xbf16, #tpu.memory_space<vmem>>, %arg8: memref<1x128xf32, #tpu.memory_space<vmem>>, %arg9: memref<1x128xf32, #tpu.memory_space<vmem>>, %arg10: memref<1x128xf32, #tpu.memory_space<vmem>>, %arg11: memref<1x16x128xbf16, #tpu.memory_space<vmem>>, %arg12: memref<1x16x128xbf16, #tpu.memory_space<vmem>>, %arg13: memref<1x16x128xbf16, #tpu.memory_space<vmem>>) attributes {dimension_semantics = [#tpu.dimension_semantics<parallel>, #tpu.dimension_semantics<parallel>], iteration_bounds = array<i64: 2, 1>, scalar_prefetch = 0 : i64, scratch_operands = 0 : i64, tpu.core_type = #tpu.core_type<tc>, window_params = [{transform_indices = @transform_0, window_bounds = array<i64: 1, 16, 128>}, {pipeline_mode = #tpu.pipeline_mode<synchronous>, transform_indices = @transform_1, window_bounds = array<i64: 1, 128>}, {pipeline_mode = #tpu.pipeline_mode<synchronous>, transform_indices = @transform_2, window_bounds = array<i64: 1, 128>}, {pipeline_mode = #tpu.pipeline_mode<synchronous>, transform_indices = @transform_3, window_bounds = array<i64: 128, 128>}, {pipeline_mode = #tpu.pipeline_mode<synchronous>, transform_indices = @transform_4, window_bounds = array<i64: 128, 128>}, {pipeline_mode = #tpu.pipeline_mode<synchronous>, transform_indices = @transform_5, window_bounds = array<i64: 128, 128>}, {pipeline_mode = #tpu.pipeline_mode<synchronous>, transform_indices = @transform_6, window_bounds = array<i64: 1, 128>}, {pipeline_mode = #tpu.pipeline_mode<synchronous>, transform_indices = @transform_7, window_bounds = array<i64: 1, 128>}, {pipeline_mode = #tpu.pipeline_mode<synchronous>, transform_indices = @transform_8, window_bounds = array<i64: 1, 128>}, {transform_indices = @transform_9, window_bounds = array<i64: 1, 16, 128>}, {transform_indices = @transform_10, window_bounds = array<i64: 1, 16, 128>}, {transform_indices = @transform_11, window_bounds = array<i64: 1, 16, 128>}]} {
    %c0 = arith.constant 0 : index
    %c0_0 = arith.constant 0 : index
    %c0_1 = arith.constant 0 : index
    %0 = vector.load %arg2[%c0, %c0_0, %c0_1] : memref<1x16x128xf32, #tpu.memory_space<vmem>>, vector<1x16x128xf32>
    %1 = vector.shape_cast %0 : vector<1x16x128xf32> to vector<16x128xf32>
    %c0_2 = arith.constant 0 : index
    %c0_3 = arith.constant 0 : index
    %2 = vector.load %arg3[%c0_2, %c0_3] : memref<1x128xf32, #tpu.memory_space<vmem>>, vector<1x128xf32>
    %c0_4 = arith.constant 0 : index
    %c0_5 = arith.constant 0 : index
    %3 = vector.load %arg4[%c0_4, %c0_5] : memref<1x128xf32, #tpu.memory_space<vmem>>, vector<1x128xf32>
    %cst = arith.constant dense<0.000000e+00> : vector<16xf32>
    %4 = vector.multi_reduction <add>, %1, %cst [1] : vector<16x128xf32> to vector<16xf32>
    %5 = vector.shape_cast %4 : vector<16xf32> to vector<16x1xf32>
    %cst_6 = arith.constant 1.280000e+02 : f32
    %6 = vector.broadcast %cst_6 : f32 to vector<16x1xf32>
    %7 = arith.divf %5, %6 : vector<16x1xf32>
    %8 = vector.broadcast %7 : vector<16x1xf32> to vector<16x128xf32>
    %9 = arith.subf %1, %8 : vector<16x128xf32>
    %10 = arith.mulf %9, %9 : vector<16x128xf32>
    %cst_7 = arith.constant dense<0.000000e+00> : vector<16xf32>
    %11 = vector.multi_reduction <add>, %10, %cst_7 [1] : vector<16x128xf32> to vector<16xf32>
    %12 = vector.shape_cast %11 : vector<16xf32> to vector<16x1xf32>
    %cst_8 = arith.constant 1.280000e+02 : f32
    %13 = vector.broadcast %cst_8 : f32 to vector<16x1xf32>
    %14 = arith.divf %12, %13 : vector<16x1xf32>
    %15 = vector.broadcast %7 : vector<16x1xf32> to vector<16x128xf32>
    %16 = arith.subf %1, %15 : vector<16x128xf32>
    %cst_9 = arith.constant 9.99999974E-6 : f32
    %17 = vector.broadcast %cst_9 : f32 to vector<16x1xf32>
    %18 = arith.addf %14, %17 : vector<16x1xf32>
    %19 = math.rsqrt %18 : vector<16x1xf32>
    %20 = vector.broadcast %19 : vector<16x1xf32> to vector<16x128xf32>
    %21 = arith.mulf %16, %20 : vector<16x128xf32>
    %22 = vector.broadcast %2 : vector<1x128xf32> to vector<16x128xf32>
    %23 = arith.mulf %21, %22 : vector<16x128xf32>
    %24 = vector.broadcast %3 : vector<1x128xf32> to vector<16x128xf32>
    %25 = arith.addf %23, %24 : vector<16x128xf32>
    %26 = arith.truncf %25 : vector<16x128xf32> to vector<16x128xbf16>
    %c0_10 = arith.constant 0 : index
    %c0_11 = arith.constant 0 : index
    %27 = vector.load %arg5[%c0_10, %c0_11] : memref<128x128xbf16, #tpu.memory_space<vmem>>, vector<128x128xbf16>
    %cst_12 = arith.constant dense<0.000000e+00> : vector<16x128xf32>
    %28 = tpu.matmul %26, %27, %cst_12 {dimension_numbers = #tpu.dot_dimension_numbers<[1], [0], [0], [1], [0, 0, 1, 1], [], []>} : vector<16x128xbf16>, vector<128x128xbf16>, vector<16x128xf32> -> vector<16x128xf32>
    %c0_13 = arith.constant 0 : index
    %c0_14 = arith.constant 0 : index
    %29 = vector.load %arg8[%c0_13, %c0_14] : memref<1x128xf32, #tpu.memory_space<vmem>>, vector<1x128xf32>
    %30 = vector.broadcast %29 : vector<1x128xf32> to vector<16x128xf32>
    %31 = arith.addf %28, %30 : vector<16x128xf32>
    %c0_15 = arith.constant 0 : index
    %c0_16 = arith.constant 0 : index
    %32 = vector.load %arg6[%c0_15, %c0_16] : memref<128x128xbf16, #tpu.memory_space<vmem>>, vector<128x128xbf16>
    %cst_17 = arith.constant dense<0.000000e+00> : vector<16x128xf32>
    %33 = tpu.matmul %26, %32, %cst_17 {dimension_numbers = #tpu.dot_dimension_numbers<[1], [0], [0], [1], [0, 0, 1, 1], [], []>} : vector<16x128xbf16>, vector<128x128xbf16>, vector<16x128xf32> -> vector<16x128xf32>
    %c0_18 = arith.constant 0 : index
    %c0_19 = arith.constant 0 : index
    %34 = vector.load %arg9[%c0_18, %c0_19] : memref<1x128xf32, #tpu.memory_space<vmem>>, vector<1x128xf32>
    %35 = vector.broadcast %34 : vector<1x128xf32> to vector<16x128xf32>
    %36 = arith.addf %33, %35 : vector<16x128xf32>
    %c0_20 = arith.constant 0 : index
    %c0_21 = arith.constant 0 : index
    %37 = vector.load %arg7[%c0_20, %c0_21] : memref<128x128xbf16, #tpu.memory_space<vmem>>, vector<128x128xbf16>
    %cst_22 = arith.constant dense<0.000000e+00> : vector<16x128xf32>
    %38 = tpu.matmul %26, %37, %cst_22 {dimension_numbers = #tpu.dot_dimension_numbers<[1], [0], [0], [1], [0, 0, 1, 1], [], []>} : vector<16x128xbf16>, vector<128x128xbf16>, vector<16x128xf32> -> vector<16x128xf32>
    %c0_23 = arith.constant 0 : index
    %c0_24 = arith.constant 0 : index
    %39 = vector.load %arg10[%c0_23, %c0_24] : memref<1x128xf32, #tpu.memory_space<vmem>>, vector<1x128xf32>
    %40 = vector.broadcast %39 : vector<1x128xf32> to vector<16x128xf32>
    %41 = arith.addf %38, %40 : vector<16x128xf32>
    %cst_25 = arith.constant 0.176776692 : f32
    %42 = vector.broadcast %cst_25 : f32 to vector<16x128xf32>
    %43 = arith.mulf %31, %42 : vector<16x128xf32>
    %44 = arith.truncf %43 : vector<16x128xf32> to vector<16x128xbf16>
    %c0_26 = arith.constant 0 : index
    %c0_27 = arith.constant 0 : index
    %c0_28 = arith.constant 0 : index
    %45 = vector.load %arg11[%c0_26, %c0_27, %c0_28] : memref<1x16x128xbf16, #tpu.memory_space<vmem>>, vector<1x16x128xbf16>
    %46 = vector.shape_cast %45 : vector<1x16x128xbf16> to vector<16x128xbf16>
    %47 = vector.shape_cast %44 : vector<16x128xbf16> to vector<1x16x128xbf16>
    tpu.vector_store %arg11[%c0_26, %c0_27, %c0_28], %47 {strides = array<i32>} : memref<1x16x128xbf16, #tpu.memory_space<vmem>>, vector<1x16x128xbf16>,
    %48 = arith.truncf %36 : vector<16x128xf32> to vector<16x128xbf16>
    %c0_29 = arith.constant 0 : index
    %c0_30 = arith.constant 0 : index
    %c0_31 = arith.constant 0 : index
    %49 = vector.load %arg12[%c0_29, %c0_30, %c0_31] : memref<1x16x128xbf16, #tpu.memory_space<vmem>>, vector<1x16x128xbf16>
    %50 = vector.shape_cast %49 : vector<1x16x128xbf16> to vector<16x128xbf16>
    %51 = vector.shape_cast %48 : vector<16x128xbf16> to vector<1x16x128xbf16>
    tpu.vector_store %arg12[%c0_29, %c0_30, %c0_31], %51 {strides = array<i32>} : memref<1x16x128xbf16, #tpu.memory_space<vmem>>, vector<1x16x128xbf16>,
    %52 = arith.truncf %41 : vector<16x128xf32> to vector<16x128xbf16>
    %c0_32 = arith.constant 0 : index
    %c0_33 = arith.constant 0 : index
    %c0_34 = arith.constant 0 : index
    %53 = vector.load %arg13[%c0_32, %c0_33, %c0_34] : memref<1x16x128xbf16, #tpu.memory_space<vmem>>, vector<1x16x128xbf16>
    %54 = vector.shape_cast %53 : vector<1x16x128xbf16> to vector<16x128xbf16>
    %55 = vector.shape_cast %52 : vector<16x128xbf16> to vector<1x16x128xbf16>
    tpu.vector_store %arg13[%c0_32, %c0_33, %c0_34], %55 {strides = array<i32>} : memref<1x16x128xbf16, #tpu.memory_space<vmem>>, vector<1x16x128xbf16>,
    return
  }
  func.func @transform_0(%arg0: i32, %arg1: i32) -> (i32, i32, i32) {
    %c0_i32 = arith.constant 0 : i32
    %c0_i32_0 = arith.constant 0 : i32
    return %arg0, %arg1, %c0_i32 : i32, i32, i32
  }
  func.func @transform_1(%arg0: i32, %arg1: i32) -> (i32, i32) {
    %c0_i32 = arith.constant 0 : i32
    %c0_i32_0 = arith.constant 0 : i32
    %c0_i32_1 = arith.constant 0 : i32
    return %c0_i32, %c0_i32_0 : i32, i32
  }
  func.func @transform_2(%arg0: i32, %arg1: i32) -> (i32, i32) {
    %c0_i32 = arith.constant 0 : i32
    %c0_i32_0 = arith.constant 0 : i32
    %c0_i32_1 = arith.constant 0 : i32
    return %c0_i32, %c0_i32_0 : i32, i32
  }
  func.func @transform_3(%arg0: i32, %arg1: i32) -> (i32, i32) {
    %c0_i32 = arith.constant 0 : i32
    %c0_i32_0 = arith.constant 0 : i32
    %c0_i32_1 = arith.constant 0 : i32
    return %c0_i32, %c0_i32_0 : i32, i32
  }
  func.func @transform_4(%arg0: i32, %arg1: i32) -> (i32, i32) {
    %c0_i32 = arith.constant 0 : i32
    %c0_i32_0 = arith.constant 0 : i32
    %c0_i32_1 = arith.constant 0 : i32
    return %c0_i32, %c0_i32_0 : i32, i32
  }
  func.func @transform_5(%arg0: i32, %arg1: i32) -> (i32, i32) {
    %c0_i32 = arith.constant 0 : i32
    %c0_i32_0 = arith.constant 0 : i32
    %c0_i32_1 = arith.constant 0 : i32
    return %c0_i32, %c0_i32_0 : i32, i32
  }
  func.func @transform_6(%arg0: i32, %arg1: i32) -> (i32, i32) {
    %c0_i32 = arith.constant 0 : i32
    %c0_i32_0 = arith.constant 0 : i32
    %c0_i32_1 = arith.constant 0 : i32
    return %c0_i32, %c0_i32_0 : i32, i32
  }
  func.func @transform_7(%arg0: i32, %arg1: i32) -> (i32, i32) {
    %c0_i32 = arith.constant 0 : i32
    %c0_i32_0 = arith.constant 0 : i32
    %c0_i32_1 = arith.constant 0 : i32
    return %c0_i32, %c0_i32_0 : i32, i32
  }
  func.func @transform_8(%arg0: i32, %arg1: i32) -> (i32, i32) {
    %c0_i32 = arith.constant 0 : i32
    %c0_i32_0 = arith.constant 0 : i32
    %c0_i32_1 = arith.constant 0 : i32
    return %c0_i32, %c0_i32_0 : i32, i32
  }
  func.func @transform_9(%arg0: i32, %arg1: i32) -> (i32, i32, i32) {
    %c0_i32 = arith.constant 0 : i32
    %c0_i32_0 = arith.constant 0 : i32
    return %arg0, %arg1, %c0_i32 : i32, i32, i32
  }
  func.func @transform_10(%arg0: i32, %arg1: i32) -> (i32, i32, i32) {
    %c0_i32 = arith.constant 0 : i32
    %c0_i32_0 = arith.constant 0 : i32
    return %arg0, %arg1, %c0_i32 : i32, i32, i32
  }
  func.func @transform_11(%arg0: i32, %arg1: i32) -> (i32, i32, i32) {
    %c0_i32 = arith.constant 0 : i32
    %c0_i32_0 = arith.constant 0 : i32
    return %arg0, %arg1, %c0_i32 : i32, i32, i32
  }
}

</mosaic_0001>

<llo_original>
// kernel: tpu_custom_call.1
$region0: #{tpu_custom_call.1}
  #allocation0 [shape = 'u32[]', space=smem, size = 0x4, offset = 0x4, fixed_abs, tag = 'smem constant byte address 0x4 - core index']
  #allocation1 [shape = 'u32[72,128]{1,0:T(1,128)}', space=vmem, size = 0x9000, scoped, tag = 'internal scratch']
  %s0 = inlined_call_operand.hbm [shape: f32[8,128], index: 0, kind: input, shape index: {}]
  %s1 = inlined_call_operand.hbm [shape: f32[8,128], index: 1, kind: output, shape index: {}]
  %s2 = sld [smem:[#allocation0]]
  $region41: #{tpu_custom_call.1} parent=0
    _
  %s4 = ssub.s32 1, %s2
  %s5 = scalar_select 0, %s4, %s2
  $region1: #{tpu_custom_call.1} parent=0
    #allocation2 [shape = 'u8[4096]{0}', space=vmem, size = 0x1000, scoped, tag = 'input window, operand 0, single buffered']
    #allocation3 [shape = 's32[2]{0}', space=sflag, size = 0x8, scoped, tag = 'scoped memory for tpu_custom_call.1']
    #allocation4 [shape = 's32[2]{0}', space=sflag, size = 0x8, scoped, tag = 'scoped memory for tpu_custom_call.1']
    #allocation5 [shape = 'u8[4096]{0}', space=vmem, size = 0x1000, scoped, tag = 'output window, operand 0, single buffered']
    %6 = vsyncpa [#allocation3], 0
    %7 = vsyncpa [#allocation4], 0
    loop: start=0, step=1, limit=4
    $region2: #{tpu_custom_call.1} parent=1 // loop_pre_header
      _
    $region3: #{tpu_custom_call.1} parent=1 // loop_header
      %s9 = sphi 0, %s13
      %p10 = scmp.ge.s32.totalorder %s9, 4
      %s17 = sphi 0, %s17
      %s19 = sphi 0, %s17
      %s20 = sphi 0, %s19
      %s34 = sphi 0, %s20
      %s38 = sphi 0, %s38
      %s40 = sphi 0, %s38
      %s41 = sphi 0, %s40
      %s55 = sphi 0, %s41
    $region4: #{tpu_custom_call.1} parent=1 // loop_header_branch
      %12 = sbr.rel (%p10) target = $region8
    $region5: #{tpu_custom_call.1} parent=1 // loop_body
      %s14 = ssub.s32 %s9, 1
      %s15 = ssub.s32 %s9, 2
      %s16 = sadd.s32 %s9, 1
      %s18 = sadd.s32 %s17, 1
      %p21 = scmp.eq.s32.totalorder %s9, 1
      %p22 = scmp.ne.s32.totalorder %s17, %s19
      %p23 = scmp.eq.s32.totalorder %s9, 0
      %p24 = por %p22, %p23
      %p25 = scmp.ne.s32.totalorder %s17, %s19
      %p26 = scmp.eq.s32.totalorder %s14, 1
      %p27 = por %p25, %p26
      %p28 = scmp.ne.s32.totalorder %s19, %s20
      %p29 = scmp.eq.s32.totalorder %s14, 0
      %p30 = por %p28, %p29
      %p31 = scmp.ne.s32.totalorder %s19, %s20
      %p32 = scmp.eq.s32.totalorder %s15, 1
      %p33 = por %p31, %p32
      %p35 = scmp.ne.s32.totalorder %s20, %s34
      %p36 = scmp.eq.s32.totalorder %s15, 0
      %p37 = por %p35, %p36
      %s39 = sadd.s32 %s38, 1
      %p42 = scmp.eq.s32.totalorder %s9, 1
      %p43 = scmp.ne.s32.totalorder %s38, %s40
      %p44 = scmp.eq.s32.totalorder %s9, 0
      %p45 = por %p43, %p44
      %p46 = scmp.ne.s32.totalorder %s38, %s40
      %p47 = scmp.eq.s32.totalorder %s14, 1
      %p48 = por %p46, %p47
      %p49 = scmp.ne.s32.totalorder %s40, %s41
      %p50 = scmp.eq.s32.totalorder %s14, 0
      %p51 = por %p49, %p50
      %p52 = scmp.ne.s32.totalorder %s40, %s41
      %p53 = scmp.eq.s32.totalorder %s15, 1
      %p54 = por %p52, %p53
      %p56 = scmp.ne.s32.totalorder %s41, %s55
      %p57 = scmp.eq.s32.totalorder %s15, 0
      %p58 = por %p56, %p57
      %p59 = scmp.le.s32.totalorder 1, %s9
      %p60 = scmp.lt.s32.totalorder %s9, 3
      %p61 = pnand %p59, %p60
      %p62 = pneg %p61
      // Predicated region
      $region9: #{tpu_custom_call.1} parent=5 // pred_check
        _
      $region10: #{tpu_custom_call.1} parent=5 // pred_check_branch
        %64 = sbr.rel (%p61) target = $region12
      $region11: #{tpu_custom_call.1} parent=5 // pred_region
        %s65 = ssub.s32 %s9, 1
        // Predicated region
        $region13: #{tpu_custom_call.1} parent=11 // pred_check
          %p66 = pneg %p30
        $region14: #{tpu_custom_call.1} parent=11 // pred_check_branch
          %68 = sbr.rel (%p66) target = $region16
        $region15: #{tpu_custom_call.1} parent=11 // pred_region
          %70 = vsyncadd [#allocation3], 0
          %s72 = sshll.u32 %s0, 4
          %s73 = int_to_ptr.hbm [resolvable:$true] %s72
          %s74 = sshll.u32 [#allocation2], 4
          %s75 = int_to_ptr.vmem [resolvable:$true] %s74
          %77 = dma.hbm_to_vmem [thread:$0]  %s73, 128, %s75, [#allocation3]
        $region16: #{tpu_custom_call.1} parent=11 // pred_fallthru
          _
      $region12: #{tpu_custom_call.1} parent=5 // pred_fallthru
        _
      %p78 = scmp.lt.s32.totalorder %s9, 2
      // Predicated region
      $region17: #{tpu_custom_call.1} parent=5 // pred_check
        %p79 = pneg %p78
      $region18: #{tpu_custom_call.1} parent=5 // pred_check_branch
        %81 = sbr.rel (%p79) target = $region20
      $region19: #{tpu_custom_call.1} parent=5 // pred_region
        _
      $region20: #{tpu_custom_call.1} parent=5 // pred_fallthru
        _
      %p82 = scmp.le.s32.totalorder 1, %s9
      %p83 = scmp.lt.s32.totalorder %s9, 3
      %p84 = pnand %p82, %p83
      %p85 = pneg %p84
      // Predicated region
      $region21: #{tpu_custom_call.1} parent=5 // pred_check
        _
      $region22: #{tpu_custom_call.1} parent=5 // pred_check_branch
        %87 = sbr.rel (%p84) target = $region24
      $region23: #{tpu_custom_call.1} parent=5 // pred_region
        %s88 = ssub.s32 %s9, 1
        // Predicated region
        $region25: #{tpu_custom_call.1} parent=23 // pred_check
          %p89 = pneg %p30
        $region26: #{tpu_custom_call.1} parent=23 // pred_check_branch
          %91 = sbr.rel (%p89) target = $region28
        $region27: #{tpu_custom_call.1} parent=23 // pred_region
          %93 = dma.done [#allocation3], 128
        $region28: #{tpu_custom_call.1} parent=23 // pred_fallthru
          _
        %p94 = pneg %p30
        %p95 = pneg %p27
        %p96 = pneg %p51
        %p97 = pneg %p48
        %v98 = vld [vmem:[#allocation2] sm:$0xff]
        %v99 = vadd.f32 %v98, 1.0
        %100 = vst [vmem:[#allocation5] sm:$0xff] %v99
        // Predicated region
        $region29: #{tpu_custom_call.1} parent=23 // pred_check
          %p101 = pneg %p48
        $region30: #{tpu_custom_call.1} parent=23 // pred_check_branch
          %103 = sbr.rel (%p101) target = $region32
        $region31: #{tpu_custom_call.1} parent=23 // pred_region
          %105 = vsyncadd [#allocation4], 0
          %s107 = sshll.u32 [#allocation5], 4
          %s108 = int_to_ptr.vmem [resolvable:$true] %s107
          %s109 = sshll.u32 %s1, 4
          %s110 = int_to_ptr.hbm [resolvable:$true] %s109
          %112 = dma.vmem_to_hbm [thread:$0]  %s108, 128, %s110, [#allocation4]
        $region32: #{tpu_custom_call.1} parent=23 // pred_fallthru
          _
        // Predicated region
        $region33: #{tpu_custom_call.1} parent=23 // pred_check
          %p113 = pneg %p48
        $region34: #{tpu_custom_call.1} parent=23 // pred_check_branch
          %115 = sbr.rel (%p113) target = $region36
        $region35: #{tpu_custom_call.1} parent=23 // pred_region
          %117 = dma.done [#allocation4], 128
        $region36: #{tpu_custom_call.1} parent=23 // pred_fallthru
          _
      $region24: #{tpu_custom_call.1} parent=5 // pred_fallthru
        _
      %p118 = scmp.le.s32.totalorder 2, %s9
      // Predicated region
      $region37: #{tpu_custom_call.1} parent=5 // pred_check
        %p119 = pneg %p118
      $region38: #{tpu_custom_call.1} parent=5 // pred_check_branch
        %121 = sbr.rel (%p119) target = $region40
      $region39: #{tpu_custom_call.1} parent=5 // pred_region
        %s122 = ssub.s32 %s9, 2
      $region40: #{tpu_custom_call.1} parent=5 // pred_fallthru
        _
    $region6: #{tpu_custom_call.1} parent=1 // loop_footer
      %s13 = sadd.s32 1, %s9
    $region7: #{tpu_custom_call.1} parent=1 // loop_footer_branch
      %8 = sbr.rel target = $region3
    $region8: #{tpu_custom_call.1} parent=1 // loop_exit
      _
    %123 = vsyncpa [#allocation3], 1
    %s124 = scalar_lea.sflag [#allocation3], 1
    %125 = vsyncpa %s124, 1
    %126 = vsyncpa [#allocation4], 1
    %s127 = scalar_lea.sflag [#allocation4], 1
    %128 = vsyncpa %s127, 1

// kernel: tpu_custom_call.1
$region0: #{tpu_custom_call.1}
  #allocation0 [shape = 'u32[]', space=smem, size = 0x4, offset = 0x4, fixed_abs, tag = 'smem constant byte address 0x4 - core index']
  #allocation1 [shape = 'u32[72,128]{1,0:T(1,128)}', space=vmem, size = 0x9000, scoped, tag = 'internal scratch']
  %s0 = inlined_call_operand.hbm [shape: f32[2,16,128], index: 0, kind: input, shape index: {}]
  %s1 = inlined_call_operand.hbm [shape: f32[1,128], index: 1, kind: input, shape index: {}]
  %s2 = inlined_call_operand.vmem [shape: f32[1,128], index: 2, kind: input, shape index: {}]
  %s3 = inlined_call_operand.hbm [shape: bf16[128,128], index: 3, kind: input, shape index: {}]
  %s4 = inlined_call_operand.hbm [shape: bf16[128,128], index: 4, kind: input, shape index: {}]
  %s5 = inlined_call_operand.hbm [shape: bf16[128,128], index: 5, kind: input, shape index: {}]
  %s6 = inlined_call_operand.vmem [shape: f32[1,128], index: 6, kind: input, shape index: {}]
  %s7 = inlined_call_operand.vmem [shape: f32[1,128], index: 7, kind: input, shape index: {}]
  %s8 = inlined_call_operand.vmem [shape: f32[1,128], index: 8, kind: input, shape index: {}]
  %s9 = inlined_call_operand.hbm [shape: bf16[2,16,128], index: 9, kind: output, shape index: {0}]
  %s10 = inlined_call_operand.hbm [shape: bf16[2,16,128], index: 10, kind: output, shape index: {1}]
  %s11 = inlined_call_operand.hbm [shape: bf16[2,16,128], index: 11, kind: output, shape index: {2}]
  %12 = xla_tuple %s9, %s10, %s11
  %s13 = sld [smem:[#allocation0]]
  $region105: #{tpu_custom_call.1} parent=0
    _
  %s15 = ssub.s32 1, %s13
  %s16 = scalar_select 0, %s15, %s13
  $region1: #{tpu_custom_call.1} parent=0
    #allocation2 [shape = 'u8[16384]{0}', space=vmem, size = 0x4000, scoped, tag = 'input window, operand 0']
    #allocation3 [shape = 's32[2]{0}', space=sflag, size = 0x8, scoped, tag = 'scoped memory for tpu_custom_call.1']
    #allocation4 [shape = 's32[2]{0}', space=sflag, size = 0x8, scoped, tag = 'scoped memory for tpu_custom_call.1']
    #allocation5 [shape = 'u8[512]{0}', space=vmem, size = 0x400, scoped, tag = 'input window, operand 1, single buffered']
    #allocation6 [shape = 's32[1]{0}', space=sflag, size = 0x4, scoped, tag = 'scoped memory for tpu_custom_call.1']
    #allocation7 [shape = 'u8[32768]{0}', space=vmem, size = 0x8000, scoped, tag = 'input window, operand 3, single buffered']
    #allocation8 [shape = 'u8[32768]{0}', space=vmem, size = 0x8000, scoped, tag = 'input window, operand 4, single buffered']
    #allocation9 [shape = 's32[1]{0}', space=sflag, size = 0x4, scoped, tag = 'scoped memory for tpu_custom_call.1']
    #allocation10 [shape = 'u8[32768]{0}', space=vmem, size = 0x8000, scoped, tag = 'input window, operand 5, single buffered']
    #allocation11 [shape = 'u8[8192]{0}', space=vmem, size = 0x2000, scoped, tag = 'output window, operand 0']
    #allocation12 [shape = 'u8[8192]{0}', space=vmem, size = 0x2000, scoped, tag = 'output window, operand 1']
    #allocation13 [shape = 's32[2]{0}', space=sflag, size = 0x8, scoped, tag = 'scoped memory for tpu_custom_call.1']
    #allocation14 [shape = 'u8[8192]{0}', space=vmem, size = 0x2000, scoped, tag = 'output window, operand 2']
    %17 = vsyncpa [#allocation3], 0
    %s18 = scalar_lea.sflag [#allocation3], 1
    %19 = vsyncpa %s18, 0
    %20 = vsyncpa [#allocation6], 0
    %21 = vsyncpa [#allocation9], 0
    %22 = vsyncpa [#allocation4], 0
    %s23 = scalar_lea.sflag [#allocation4], 1
    %24 = vsyncpa %s23, 0
    %25 = vsyncpa [#allocation13], 0
    %s26 = scalar_lea.sflag [#allocation13], 1
    %27 = vsyncpa %s26, 0
    loop: start=0, step=1, limit=4
    $region2: #{tpu_custom_call.1} parent=1 // loop_pre_header
      _
    $region3: #{tpu_custom_call.1} parent=1 // loop_header
      %s29 = sphi 0, %s33
      %p30 = scmp.ge.s32.totalorder %s29, 4
      %s36 = sphi 0, %s48
      %s37 = sphi 0, %s44
      %s38 = sphi 0, %s36
      %s39 = sphi 0, %s37
      %s40 = sphi 0, %s38
      %s41 = sphi 0, %s39
      %s53 = sphi 0, %s55
      %s56 = sphi 0, %s53
      %s57 = sphi 0, %s56
      %s73 = sphi 0, %s57
      %s77 = sphi 0, %s77
      %s79 = sphi 0, %s77
      %s80 = sphi 0, %s79
      %s94 = sphi 0, %s80
      %s98 = sphi 0, %s98
      %s100 = sphi 0, %s98
      %s101 = sphi 0, %s100
      %s115 = sphi 0, %s101
      %s119 = sphi 0, %s119
      %s121 = sphi 0, %s119
      %s122 = sphi 0, %s121
      %s136 = sphi 0, %s122
      %s140 = sphi 0, %s140
      %s142 = sphi 0, %s140
      %s143 = sphi 0, %s142
      %s157 = sphi 0, %s143
      %s161 = sphi 0, %s161
      %s163 = sphi 0, %s161
      %s164 = sphi 0, %s163
      %s178 = sphi 0, %s164
      %s182 = sphi 0, %s182
      %s184 = sphi 0, %s182
      %s185 = sphi 0, %s184
      %s199 = sphi 0, %s185
      %s203 = sphi 0, %s203
      %s205 = sphi 0, %s203
      %s206 = sphi 0, %s205
      %s220 = sphi 0, %s206
      %s224 = sphi 0, %s224
      %s226 = sphi 0, %s224
      %s227 = sphi 0, %s226
      %s241 = sphi 0, %s227
      %s249 = sphi 0, %s251
      %s252 = sphi 0, %s249
      %s253 = sphi 0, %s252
      %s269 = sphi 0, %s253
      %s277 = sphi 0, %s279
      %s280 = sphi 0, %s277
      %s281 = sphi 0, %s280
      %s297 = sphi 0, %s281
      %s305 = sphi 0, %s307
      %s308 = sphi 0, %s305
      %s309 = sphi 0, %s308
      %s325 = sphi 0, %s309
    $region4: #{tpu_custom_call.1} parent=1 // loop_header_branch
      %32 = sbr.rel (%p30) target = $region8
    $region5: #{tpu_custom_call.1} parent=1 // loop_body
      %s34 = ssub.s32 %s29, 1
      %s35 = ssub.s32 %s29, 2
      %s42 = sadd.s32 1, %s37
      %p43 = scmp.ge.s32.totalorder %s42, 1
      %s44 = scalar_select %p43, 0, %s42
      %s45 = sadd.s32 1, %s36
      %s46 = scalar_select %p43, %s45, %s36
      %p47 = scmp.ge.s32.totalorder %s46, 2
      %s48 = scalar_select %p47, 0, %s46
      %s49 = ssub.s32 %s36, %s48
      %s50 = ssub.s32 %s37, %s44
      %s51 = sor.u32 %s49, %s50
      %p52 = scmp.eq.s32.totalorder %s51, 0
      %s54 = sadd.s32 %s53, 1
      %s55 = scalar_select %p52, %s53, %s54
      %p58 = pneg %p52
      %p59 = scmp.eq.s32.totalorder %s29, 1
      %p60 = por %p58, %p59
      %p61 = scmp.ne.s32.totalorder %s53, %s56
      %p62 = scmp.eq.s32.totalorder %s29, 0
      %p63 = por %p61, %p62
      %p64 = scmp.ne.s32.totalorder %s53, %s56
      %p65 = scmp.eq.s32.totalorder %s34, 1
      %p66 = por %p64, %p65
      %p67 = scmp.ne.s32.totalorder %s56, %s57
      %p68 = scmp.eq.s32.totalorder %s34, 0
      %p69 = por %p67, %p68
      %p70 = scmp.ne.s32.totalorder %s56, %s57
      %p71 = scmp.eq.s32.totalorder %s35, 1
      %p72 = por %p70, %p71
      %p74 = scmp.ne.s32.totalorder %s57, %s73
      %p75 = scmp.eq.s32.totalorder %s35, 0
      %p76 = por %p74, %p75
      %s78 = sadd.s32 %s77, 1
      %p81 = scmp.eq.s32.totalorder %s29, 1
      %p82 = scmp.ne.s32.totalorder %s77, %s79
      %p83 = scmp.eq.s32.totalorder %s29, 0
      %p84 = por %p82, %p83
      %p85 = scmp.ne.s32.totalorder %s77, %s79
      %p86 = scmp.eq.s32.totalorder %s34, 1
      %p87 = por %p85, %p86
      %p88 = scmp.ne.s32.totalorder %s79, %s80
      %p89 = scmp.eq.s32.totalorder %s34, 0
      %p90 = por %p88, %p89
      %p91 = scmp.ne.s32.totalorder %s79, %s80
      %p92 = scmp.eq.s32.totalorder %s35, 1
      %p93 = por %p91, %p92
      %p95 = scmp.ne.s32.totalorder %s80, %s94
      %p96 = scmp.eq.s32.totalorder %s35, 0
      %p97 = por %p95, %p96
      %s99 = sadd.s32 %s98, 1
      %p102 = scmp.eq.s32.totalorder %s29, 1
      %p103 = scmp.ne.s32.totalorder %s98, %s100
      %p104 = scmp.eq.s32.totalorder %s29, 0
      %p105 = por %p103, %p104
      %p106 = scmp.ne.s32.totalorder %s98, %s100
      %p107 = scmp.eq.s32.totalorder %s34, 1
      %p108 = por %p106, %p107
      %p109 = scmp.ne.s32.totalorder %s100, %s101
      %p110 = scmp.eq.s32.totalorder %s34, 0
      %p111 = por %p109, %p110
      %p112 = scmp.ne.s32.totalorder %s100, %s101
      %p113 = scmp.eq.s32.totalorder %s35, 1
      %p114 = por %p112, %p113
      %p116 = scmp.ne.s32.totalorder %s101, %s115
      %p117 = scmp.eq.s32.totalorder %s35, 0
      %p118 = por %p116, %p117
      %s120 = sadd.s32 %s119, 1
      %p123 = scmp.eq.s32.totalorder %s29, 1
      %p124 = scmp.ne.s32.totalorder %s119, %s121
      %p125 = scmp.eq.s32.totalorder %s29, 0
      %p126 = por %p124, %p125
      %p127 = scmp.ne.s32.totalorder %s119, %s121
      %p128 = scmp.eq.s32.totalorder %s34, 1
      %p129 = por %p127, %p128
      %p130 = scmp.ne.s32.totalorder %s121, %s122
      %p131 = scmp.eq.s32.totalorder %s34, 0
      %p132 = por %p130, %p131
      %p133 = scmp.ne.s32.totalorder %s121, %s122
      %p134 = scmp.eq.s32.totalorder %s35, 1
      %p135 = por %p133, %p134
      %p137 = scmp.ne.s32.totalorder %s122, %s136
      %p138 = scmp.eq.s32.totalorder %s35, 0
      %p139 = por %p137, %p138
      %s141 = sadd.s32 %s140, 1
      %p144 = scmp.eq.s32.totalorder %s29, 1
      %p145 = scmp.ne.s32.totalorder %s140, %s142
      %p146 = scmp.eq.s32.totalorder %s29, 0
      %p147 = por %p145, %p146
      %p148 = scmp.ne.s32.totalorder %s140, %s142
      %p149 = scmp.eq.s32.totalorder %s34, 1
      %p150 = por %p148, %p149
      %p151 = scmp.ne.s32.totalorder %s142, %s143
      %p152 = scmp.eq.s32.totalorder %s34, 0
      %p153 = por %p151, %p152
      %p154 = scmp.ne.s32.totalorder %s142, %s143
      %p155 = scmp.eq.s32.totalorder %s35, 1
      %p156 = por %p154, %p155
      %p158 = scmp.ne.s32.totalorder %s143, %s157
      %p159 = scmp.eq.s32.totalorder %s35, 0
      %p160 = por %p158, %p159
      %s162 = sadd.s32 %s161, 1
      %p165 = scmp.eq.s32.totalorder %s29, 1
      %p166 = scmp.ne.s32.totalorder %s161, %s163
      %p167 = scmp.eq.s32.totalorder %s29, 0
      %p168 = por %p166, %p167
      %p169 = scmp.ne.s32.totalorder %s161, %s163
      %p170 = scmp.eq.s32.totalorder %s34, 1
      %p171 = por %p169, %p170
      %p172 = scmp.ne.s32.totalorder %s163, %s164
      %p173 = scmp.eq.s32.totalorder %s34, 0
      %p174 = por %p172, %p173
      %p175 = scmp.ne.s32.totalorder %s163, %s164
      %p176 = scmp.eq.s32.totalorder %s35, 1
      %p177 = por %p175, %p176
      %p179 = scmp.ne.s32.totalorder %s164, %s178
      %p180 = scmp.eq.s32.totalorder %s35, 0
      %p181 = por %p179, %p180
      %s183 = sadd.s32 %s182, 1
      %p186 = scmp.eq.s32.totalorder %s29, 1
      %p187 = scmp.ne.s32.totalorder %s182, %s184
      %p188 = scmp.eq.s32.totalorder %s29, 0
      %p189 = por %p187, %p188
      %p190 = scmp.ne.s32.totalorder %s182, %s184
      %p191 = scmp.eq.s32.totalorder %s34, 1
      %p192 = por %p190, %p191
      %p193 = scmp.ne.s32.totalorder %s184, %s185
      %p194 = scmp.eq.s32.totalorder %s34, 0
      %p195 = por %p193, %p194
      %p196 = scmp.ne.s32.totalorder %s184, %s185
      %p197 = scmp.eq.s32.totalorder %s35, 1
      %p198 = por %p196, %p197
      %p200 = scmp.ne.s32.totalorder %s185, %s199
      %p201 = scmp.eq.s32.totalorder %s35, 0
      %p202 = por %p200, %p201
      %s204 = sadd.s32 %s203, 1
      %p207 = scmp.eq.s32.totalorder %s29, 1
      %p208 = scmp.ne.s32.totalorder %s203, %s205
      %p209 = scmp.eq.s32.totalorder %s29, 0
      %p210 = por %p208, %p209
      %p211 = scmp.ne.s32.totalorder %s203, %s205
      %p212 = scmp.eq.s32.totalorder %s34, 1
      %p213 = por %p211, %p212
      %p214 = scmp.ne.s32.totalorder %s205, %s206
      %p215 = scmp.eq.s32.totalorder %s34, 0
      %p216 = por %p214, %p215
      %p217 = scmp.ne.s32.totalorder %s205, %s206
      %p218 = scmp.eq.s32.totalorder %s35, 1
      %p219 = por %p217, %p218
      %p221 = scmp.ne.s32.totalorder %s206, %s220
      %p222 = scmp.eq.s32.totalorder %s35, 0
      %p223 = por %p221, %p222
      %s225 = sadd.s32 %s224, 1
      %p228 = scmp.eq.s32.totalorder %s29, 1
      %p229 = scmp.ne.s32.totalorder %s224, %s226
      %p230 = scmp.eq.s32.totalorder %s29, 0
      %p231 = por %p229, %p230
      %p232 = scmp.ne.s32.totalorder %s224, %s226
      %p233 = scmp.eq.s32.totalorder %s34, 1
      %p234 = por %p232, %p233
      %p235 = scmp.ne.s32.totalorder %s226, %s227
      %p236 = scmp.eq.s32.totalorder %s34, 0
      %p237 = por %p235, %p236
      %p238 = scmp.ne.s32.totalorder %s226, %s227
      %p239 = scmp.eq.s32.totalorder %s35, 1
      %p240 = por %p238, %p239
      %p242 = scmp.ne.s32.totalorder %s227, %s241
      %p243 = scmp.eq.s32.totalorder %s35, 0
      %p244 = por %p242, %p243
      %s245 = ssub.s32 %s36, %s48
      %s246 = ssub.s32 %s37, %s44
      %s247 = sor.u32 %s245, %s246
      %p248 = scmp.eq.s32.totalorder %s247, 0
      %s250 = sadd.s32 %s249, 1
      %s251 = scalar_select %p248, %s249, %s250
      %p254 = pneg %p248
      %p255 = scmp.eq.s32.totalorder %s29, 1
      %p256 = por %p254, %p255
      %p257 = scmp.ne.s32.totalorder %s249, %s252
      %p258 = scmp.eq.s32.totalorder %s29, 0
      %p259 = por %p257, %p258
      %p260 = scmp.ne.s32.totalorder %s249, %s252
      %p261 = scmp.eq.s32.totalorder %s34, 1
      %p262 = por %p260, %p261
      %p263 = scmp.ne.s32.totalorder %s252, %s253
      %p264 = scmp.eq.s32.totalorder %s34, 0
      %p265 = por %p263, %p264
      %p266 = scmp.ne.s32.totalorder %s252, %s253
      %p267 = scmp.eq.s32.totalorder %s35, 1
      %p268 = por %p266, %p267
      %p270 = scmp.ne.s32.totalorder %s253, %s269
      %p271 = scmp.eq.s32.totalorder %s35, 0
      %p272 = por %p270, %p271
      %s273 = ssub.s32 %s36, %s48
      %s274 = ssub.s32 %s37, %s44
      %s275 = sor.u32 %s273, %s274
      %p276 = scmp.eq.s32.totalorder %s275, 0
      %s278 = sadd.s32 %s277, 1
      %s279 = scalar_select %p276, %s277, %s278
      %p282 = pneg %p276
      %p283 = scmp.eq.s32.totalorder %s29, 1
      %p284 = por %p282, %p283
      %p285 = scmp.ne.s32.totalorder %s277, %s280
      %p286 = scmp.eq.s32.totalorder %s29, 0
      %p287 = por %p285, %p286
      %p288 = scmp.ne.s32.totalorder %s277, %s280
      %p289 = scmp.eq.s32.totalorder %s34, 1
      %p290 = por %p288, %p289
      %p291 = scmp.ne.s32.totalorder %s280, %s281
      %p292 = scmp.eq.s32.totalorder %s34, 0
      %p293 = por %p291, %p292
      %p294 = scmp.ne.s32.totalorder %s280, %s281
      %p295 = scmp.eq.s32.totalorder %s35, 1
      %p296 = por %p294, %p295
      %p298 = scmp.ne.s32.totalorder %s281, %s297
      %p299 = scmp.eq.s32.totalorder %s35, 0
      %p300 = por %p298, %p299
      %s301 = ssub.s32 %s36, %s48
      %s302 = ssub.s32 %s37, %s44
      %s303 = sor.u32 %s301, %s302
      %p304 = scmp.eq.s32.totalorder %s303, 0
      %s306 = sadd.s32 %s305, 1
      %s307 = scalar_select %p304, %s305, %s306
      %p310 = pneg %p304
      %p311 = scmp.eq.s32.totalorder %s29, 1
      %p312 = por %p310, %p311
      %p313 = scmp.ne.s32.totalorder %s305, %s308
      %p314 = scmp.eq.s32.totalorder %s29, 0
      %p315 = por %p313, %p314
      %p316 = scmp.ne.s32.totalorder %s305, %s308
      %p317 = scmp.eq.s32.totalorder %s34, 1
      %p318 = por %p316, %p317
      %p319 = scmp.ne.s32.totalorder %s308, %s309
      %p320 = scmp.eq.s32.totalorder %s34, 0
      %p321 = por %p319, %p320
      %p322 = scmp.ne.s32.totalorder %s308, %s309
      %p323 = scmp.eq.s32.totalorder %s35, 1
      %p324 = por %p322, %p323
      %p326 = scmp.ne.s32.totalorder %s309, %s325
      %p327 = scmp.eq.s32.totalorder %s35, 0
      %p328 = por %p326, %p327
      %p329 = scmp.le.s32.totalorder 1, %s29
      %p330 = scmp.lt.s32.totalorder %s29, 3
      %p331 = pnand %p329, %p330
      %p332 = pneg %p331
      // Predicated region
      $region9: #{tpu_custom_call.1} parent=5 // pred_check
        _
      $region10: #{tpu_custom_call.1} parent=5 // pred_check_branch
        %334 = sbr.rel (%p331) target = $region12
      $region11: #{tpu_custom_call.1} parent=5 // pred_region
        %s335 = ssub.s32 %s29, 1
        // Predicated region
        $region13: #{tpu_custom_call.1} parent=11 // pred_check
          %p336 = pneg %p90
        $region14: #{tpu_custom_call.1} parent=11 // pred_check_branch
          %338 = sbr.rel (%p336) target = $region16
        $region15: #{tpu_custom_call.1} parent=11 // pred_region
          %340 = vsyncadd [#allocation6], 0
          %s342 = sshll.u32 %s1, 4
          %s343 = int_to_ptr.hbm [resolvable:$true] %s342
          %s344 = sshll.u32 [#allocation5], 4
          %s345 = int_to_ptr.vmem [resolvable:$true] %s344
          %347 = dma.hbm_to_vmem [thread:$0]  %s343, 16, %s345, [#allocation6]
        $region16: #{tpu_custom_call.1} parent=11 // pred_fallthru
          _
        // Predicated region
        $region17: #{tpu_custom_call.1} parent=11 // pred_check
          %p348 = pneg %p111
        $region18: #{tpu_custom_call.1} parent=11 // pred_check_branch
          %350 = sbr.rel (%p348) target = $region20
        $region19: #{tpu_custom_call.1} parent=11 // pred_region
          _
        $region20: #{tpu_custom_call.1} parent=11 // pred_fallthru
          _
        // Predicated region
        $region21: #{tpu_custom_call.1} parent=11 // pred_check
          %p351 = pneg %p132
        $region22: #{tpu_custom_call.1} parent=11 // pred_check_branch
          %353 = sbr.rel (%p351) target = $region24
        $region23: #{tpu_custom_call.1} parent=11 // pred_region
          %355 = vsyncadd [#allocation6], 0
          %s356 = sshll.u32 %s3, 4
          %s357 = int_to_ptr.hbm [resolvable:$true] %s356
          %s358 = sshll.u32 [#allocation7], 4
          %s359 = int_to_ptr.vmem [resolvable:$true] %s358
          %364 = dma.hbm_to_vmem [thread:$0]  %s357, 1024, %s359, [#allocation6], 64, 64, 4
        $region24: #{tpu_custom_call.1} parent=11 // pred_fallthru
          _
        // Predicated region
        $region25: #{tpu_custom_call.1} parent=11 // pred_check
          %p365 = pneg %p153
        $region26: #{tpu_custom_call.1} parent=11 // pred_check_branch
          %367 = sbr.rel (%p365) target = $region28
        $region27: #{tpu_custom_call.1} parent=11 // pred_region
          %369 = vsyncadd [#allocation9], 0
          %s370 = sshll.u32 %s4, 4
          %s371 = int_to_ptr.hbm [resolvable:$true] %s370
          %s372 = sshll.u32 [#allocation8], 4
          %s373 = int_to_ptr.vmem [resolvable:$true] %s372
          %378 = dma.hbm_to_vmem [thread:$0]  %s371, 1024, %s373, [#allocation9], 64, 64, 4
        $region28: #{tpu_custom_call.1} parent=11 // pred_fallthru
          _
        // Predicated region
        $region29: #{tpu_custom_call.1} parent=11 // pred_check
          %p379 = pneg %p174
        $region30: #{tpu_custom_call.1} parent=11 // pred_check_branch
          %381 = sbr.rel (%p379) target = $region32
        $region31: #{tpu_custom_call.1} parent=11 // pred_region
          %383 = vsyncadd [#allocation9], 0
          %s384 = sshll.u32 %s5, 4
          %s385 = int_to_ptr.hbm [resolvable:$true] %s384
          %s386 = sshll.u32 [#allocation10], 4
          %s387 = int_to_ptr.vmem [resolvable:$true] %s386
          %392 = dma.hbm_to_vmem [thread:$0]  %s385, 1024, %s387, [#allocation9], 64, 64, 4
        $region32: #{tpu_custom_call.1} parent=11 // pred_fallthru
          _
        // Predicated region
        $region33: #{tpu_custom_call.1} parent=11 // pred_check
          %p393 = pneg %p195
        $region34: #{tpu_custom_call.1} parent=11 // pred_check_branch
          %395 = sbr.rel (%p393) target = $region36
        $region35: #{tpu_custom_call.1} parent=11 // pred_region
          _
        $region36: #{tpu_custom_call.1} parent=11 // pred_fallthru
          _
        // Predicated region
        $region37: #{tpu_custom_call.1} parent=11 // pred_check
          %p396 = pneg %p216
        $region38: #{tpu_custom_call.1} parent=11 // pred_check_branch
          %398 = sbr.rel (%p396) target = $region40
        $region39: #{tpu_custom_call.1} parent=11 // pred_region
          _
        $region40: #{tpu_custom_call.1} parent=11 // pred_fallthru
          _
        // Predicated region
        $region41: #{tpu_custom_call.1} parent=11 // pred_check
          %p399 = pneg %p237
        $region42: #{tpu_custom_call.1} parent=11 // pred_check_branch
          %401 = sbr.rel (%p399) target = $region44
        $region43: #{tpu_custom_call.1} parent=11 // pred_region
          _
        $region44: #{tpu_custom_call.1} parent=11 // pred_fallthru
          _
      $region12: #{tpu_custom_call.1} parent=5 // pred_fallthru
        _
      %p402 = scmp.lt.s32.totalorder %s29, 2
      // Predicated region
      $region45: #{tpu_custom_call.1} parent=5 // pred_check
        %p403 = pneg %p402
      $region46: #{tpu_custom_call.1} parent=5 // pred_check_branch
        %405 = sbr.rel (%p403) target = $region48
      $region47: #{tpu_custom_call.1} parent=5 // pred_region
        // Predicated region
        $region49: #{tpu_custom_call.1} parent=47 // pred_check
          %p406 = pneg %p63
        $region50: #{tpu_custom_call.1} parent=47 // pred_check_branch
          %408 = sbr.rel (%p406) target = $region52
        $region51: #{tpu_custom_call.1} parent=47 // pred_region
          %s409 = sand.u32 %s53, 1
          %s410 = scalar_lea.sflag [#allocation3], %s409
          %s411 = sand.u32 %s53, 1
          %s412 = smul.addr %s411, 16
          %s413 = scalar_lea.vmem [#allocation2], %s412
          %s414 = smul.u32 2, %s37
          %416 = vsyncadd %s410, 0
          %s417 = smul.addr %s36, 2
          %s418 = sadd.s32 %s414, %s417
          %s419 = smul.addr %s418, 8
          %s420 = scalar_lea.hbm %s0, %s419
          %s421 = sshll.u32 %s420, 4
          %s422 = int_to_ptr.hbm [resolvable:$true] %s421
          %s423 = sshll.u32 %s413, 4
          %s424 = int_to_ptr.vmem [resolvable:$true] %s423
          %429 = dma.hbm_to_vmem [thread:$0]  %s422, 256, %s424, %s410, 128, 128, 8
        $region52: #{tpu_custom_call.1} parent=47 // pred_fallthru
          _
      $region48: #{tpu_custom_call.1} parent=5 // pred_fallthru
        _
      %p430 = scmp.le.s32.totalorder 1, %s29
      %p431 = scmp.lt.s32.totalorder %s29, 3
      %p432 = pnand %p430, %p431
      %p433 = pneg %p432
      // Predicated region
      $region53: #{tpu_custom_call.1} parent=5 // pred_check
        _
      $region54: #{tpu_custom_call.1} parent=5 // pred_check_branch
        %435 = sbr.rel (%p432) target = $region56
      $region55: #{tpu_custom_call.1} parent=5 // pred_region
        %s436 = ssub.s32 %s29, 1
        %s437 = sand.u32 %s56, 1
        %s438 = scalar_lea.sflag [#allocation3], %s437
        %s439 = sand.u32 %s56, 1
        %s440 = smul.addr %s439, 16
        %s441 = scalar_lea.vmem [#allocation2], %s440
        // Predicated region
        $region57: #{tpu_custom_call.1} parent=55 // pred_check
          %p442 = pneg %p69
        $region58: #{tpu_custom_call.1} parent=55 // pred_check_branch
          %444 = sbr.rel (%p442) target = $region60
        $region59: #{tpu_custom_call.1} parent=55 // pred_region
          %446 = dma.done %s438, 256
        $region60: #{tpu_custom_call.1} parent=55 // pred_fallthru
          _
        // Predicated region
        $region61: #{tpu_custom_call.1} parent=55 // pred_check
          %p447 = pneg %p90
        $region62: #{tpu_custom_call.1} parent=55 // pred_check_branch
          %449 = sbr.rel (%p447) target = $region64
        $region63: #{tpu_custom_call.1} parent=55 // pred_region
          %451 = dma.done [#allocation6], 16
        $region64: #{tpu_custom_call.1} parent=55 // pred_fallthru
          _
        // Predicated region
        $region65: #{tpu_custom_call.1} parent=55 // pred_check
          %p452 = pneg %p132
        $region66: #{tpu_custom_call.1} parent=55 // pred_check_branch
          %454 = sbr.rel (%p452) target = $region68
        $region67: #{tpu_custom_call.1} parent=55 // pred_region
          %456 = dma.done [#allocation6], 1024
        $region68: #{tpu_custom_call.1} parent=55 // pred_fallthru
          _
        // Predicated region
        $region69: #{tpu_custom_call.1} parent=55 // pred_check
          %p457 = pneg %p153
        $region70: #{tpu_custom_call.1} parent=55 // pred_check_branch
          %459 = sbr.rel (%p457) target = $region72
        $region71: #{tpu_custom_call.1} parent=55 // pred_region
          %461 = dma.done [#allocation9], 1024
        $region72: #{tpu_custom_call.1} parent=55 // pred_fallthru
          _
        // Predicated region
        $region73: #{tpu_custom_call.1} parent=55 // pred_check
          %p462 = pneg %p174
        $region74: #{tpu_custom_call.1} parent=55 // pred_check_branch
          %464 = sbr.rel (%p462) target = $region76
        $region75: #{tpu_custom_call.1} parent=55 // pred_region
          %466 = dma.done [#allocation9], 1024
        $region76: #{tpu_custom_call.1} parent=55 // pred_fallthru
          _
        %s467 = sand.u32 %s56, 1
        %s468 = scalar_lea.sflag [#allocation3], %s467
        %s469 = sand.u32 %s56, 1
        %s470 = smul.addr %s469, 16
        %s471 = scalar_lea.vmem [#allocation2], %s470
        %p472 = pneg %p69
        %p473 = pneg %p66
        %p474 = pneg %p90
        %p475 = pneg %p87
        %p476 = pneg %p111
        %p477 = pneg %p108
        %p478 = pneg %p132
        %p479 = pneg %p129
        %p480 = pneg %p153
        %p481 = pneg %p150
        %p482 = pneg %p174
        %p483 = pneg %p171
        %p484 = pneg %p195
        %p485 = pneg %p192
        %p486 = pneg %p216
        %p487 = pneg %p213
        %p488 = pneg %p237
        %p489 = pneg %p234
        %p490 = pneg %p265
        %p491 = pneg %p262
        %s492 = sand.u32 %s252, 1
        %s493 = scalar_lea.sflag [#allocation4], %s492
        %s494 = sand.u32 %s252, 1
        %s495 = smul.addr %s494, 8
        %s496 = scalar_lea.vmem [#allocation11], %s495
        %p497 = pneg %p293
        %p498 = pneg %p290
        %s499 = sand.u32 %s34, 1
        %s500 = scalar_lea.sflag [#allocation13], %s499
        %s501 = sand.u32 %s280, 1
        %s502 = smul.addr %s501, 8
        %s503 = scalar_lea.vmem [#allocation12], %s502
        %p504 = pneg %p321
        %p505 = pneg %p318
        %s506 = sand.u32 %s34, 1
        %s507 = scalar_lea.sflag [#allocation13], %s506
        %s508 = sand.u32 %s308, 1
        %s509 = smul.addr %s508, 8
        %s510 = scalar_lea.vmem [#allocation14], %s509
        %s511 = smul.u32 2, %s39
        %s512 = smul.u32 2, %s39
        %s513 = smul.u32 2, %s39
        %s514 = smul.u32 2, %s39
        %v515 = vld [vmem:[%s441] sm:$0xff]
        %v516 = vld [vmem:[%s441 + $0x8] sm:$0xff]
        %v517 = vld [vmem:[#allocation5] sm:$0x1]
        %v518 = vld [vmem:[%s2] sm:$0x1]
        %519 = vadd.xlane.f32.xlu0 %v515
        %v520 = vpop.xlane.xlu0 %519
        %521 = vadd.xlane.f32.xlu0 %v516
        %v522 = vpop.xlane.xlu0 %521
        %v523 = vrcp.pop 128.0
        %v524 = vmul.f32 128.0, %v523
        %v525 = vsub.f32 1.0, %v524
        %v526 = vmul.f32 %v523, %v525
        %v527 = vadd.f32 %v523, %v526
        %vm528 = vweird.f32 %v523
        %v529 = vsel %vm528, %v523, %v527
        %v530 = vmul.f32 %v520, %v529
        %v531 = vmul.f32 %v522, %v529
        %v532 = vsub.f32 %v515, %v530
        %v533 = vsub.f32 %v516, %v531
        %v534 = vmul.f32 %v532, %v532
        %v535 = vmul.f32 %v533, %v533
        %536 = vadd.xlane.f32.xlu0 %v534
        %v537 = vpop.xlane.xlu0 %536
        %538 = vadd.xlane.f32.xlu0 %v535
        %v539 = vpop.xlane.xlu0 %538
        %v540 = vmul.f32 %v537, %v529
        %v541 = vmul.f32 %v539, %v529
        %v542 = vadd.f32 %v540, 1e-05
        %v543 = vadd.f32 %v541, 1e-05
        %v544 = vrsqrt.pop %v542
        %v545 = vmul.f32 %v544, %v542
        %v546 = vmul.f32 %v545, %v544
        %v547 = vmul.f32 0.5, %v546
        %v548 = vsub.f32 1.5, %v547
        %v549 = vmul.f32 %v544, %v548
        %vm550 = vweird.f32 %v542
        %vm551 = vweird.f32 %v544
        %vm552 = vmor %vm550, %vm551
        %v553 = vsel %vm552, %v544, %v549
        %v554 = vrsqrt.pop %v543
        %v555 = vmul.f32 %v554, %v543
        %v556 = vmul.f32 %v555, %v554
        %v557 = vmul.f32 0.5, %v556
        %v558 = vsub.f32 1.5, %v557
        %v559 = vmul.f32 %v554, %v558
        %vm560 = vweird.f32 %v543
        %vm561 = vweird.f32 %v554
        %vm562 = vmor %vm560, %vm561
        %v563 = vsel %vm562, %v554, %v559
        %v564 = vmul.f32 %v532, %v553
        %v565 = vmul.f32 %v533, %v563
        %v567 = vperm.slane %v517, 0
        %v569 = vmul.f32 %v564, %v567
        %v570 = vmul.f32 %v565, %v567
        %v572 = vperm.slane %v518, 0
        %v574 = vadd.f32 %v569, %v572
        %v575 = vadd.f32 %v570, %v572
        %v576 = vpack.c.bf16 %v575, %v574
        %v577 = vld [vmem:[#allocation7] sm:$0xf]
        %v578 = vld [vmem:[#allocation7 + $0x4] sm:$0xf]
        %v579 = vld [vmem:[#allocation7 + $0x8] sm:$0xf]
        %v580 = vld [vmem:[#allocation7 + $0xc] sm:$0xf]
        %v581 = vld [vmem:[#allocation7 + $0x10] sm:$0xf]
        %v582 = vld [vmem:[#allocation7 + $0x14] sm:$0xf]
        %v583 = vld [vmem:[#allocation7 + $0x18] sm:$0xf]
        %v584 = vld [vmem:[#allocation7 + $0x1c] sm:$0xf]
        %v585 = vld [vmem:[#allocation7 + $0x20] sm:$0xf]
        %v586 = vld [vmem:[#allocation7 + $0x24] sm:$0xf]
        %v587 = vld [vmem:[#allocation7 + $0x28] sm:$0xf]
        %v588 = vld [vmem:[#allocation7 + $0x2c] sm:$0xf]
        %v589 = vld [vmem:[#allocation7 + $0x30] sm:$0xf]
        %v590 = vld [vmem:[#allocation7 + $0x34] sm:$0xf]
        %v591 = vld [vmem:[#allocation7 + $0x38] sm:$0xf]
        %v592 = vld [vmem:[#allocation7 + $0x3c] sm:$0xf]
        %v593 = vld [vmem:[%s6] sm:$0x1]
        %v595 = vperm.slane %v593, 0
        %v613 = vunpack.c.l.b16 %v577
        %v614 = vunpack.c.l.b16 %v578
        %v615 = vunpack.c.l.b16 %v579
        %v616 = vunpack.c.l.b16 %v580
        %v617 = vunpack.c.l.b16 %v581
        %v618 = vunpack.c.l.b16 %v582
        %v619 = vunpack.c.l.b16 %v583
        %v620 = vunpack.c.l.b16 %v584
        %v621 = vunpack.c.l.b16 %v585
        %v622 = vunpack.c.l.b16 %v586
        %v623 = vunpack.c.l.b16 %v587
        %v624 = vunpack.c.l.b16 %v588
        %v625 = vunpack.c.l.b16 %v589
        %v626 = vunpack.c.l.b16 %v590
        %v627 = vunpack.c.l.b16 %v591
        %v628 = vunpack.c.l.b16 %v592
        %v629 = vpack.c.b16 %v614, %v613
        %v630 = vpack.c.b16 %v616, %v615
        %v631 = vpack.c.b16 %v618, %v617
        %v632 = vpack.c.b16 %v620, %v619
        %v633 = vpack.c.b16 %v622, %v621
        %v634 = vpack.c.b16 %v624, %v623
        %v635 = vpack.c.b16 %v626, %v625
        %v636 = vpack.c.b16 %v628, %v627
        %645 = vmatpush.bf16.msra.mxu0 %v636
        %646 = vmatpush.bf16.msra.mxu0 %v635
        %647 = vmatpush.bf16.msra.mxu0 %v634
        %648 = vmatpush.bf16.msra.mxu0 %v633
        %649 = vmatpush.bf16.msra.mxu0 %v632
        %650 = vmatpush.bf16.msra.mxu0 %v631
        %651 = vmatpush.bf16.msra.mxu0 %v630
        %652 = vmatpush.bf16.msra.mxu0 %v629
        %653 = vmatmul.bf16.gmra.mxu0 %v576
        %v654 = vpop.f32.mrf.mxu0
        %v655 = vadd.f32 %v595, %v654
        %v656 = vpop.f32.mrf.mxu0
        %v657 = vadd.f32 %v595, %v656
        %658 = vdwg.mxu0
        %v659 = vld [vmem:[#allocation8] sm:$0xf]
        %v660 = vld [vmem:[#allocation8 + $0x4] sm:$0xf]
        %v661 = vld [vmem:[#allocation8 + $0x8] sm:$0xf]
        %v662 = vld [vmem:[#allocation8 + $0xc] sm:$0xf]
        %v663 = vld [vmem:[#allocation8 + $0x10] sm:$0xf]
        %v664 = vld [vmem:[#allocation8 + $0x14] sm:$0xf]
        %v665 = vld [vmem:[#allocation8 + $0x18] sm:$0xf]
        %v666 = vld [vmem:[#allocation8 + $0x1c] sm:$0xf]
        %v667 = vld [vmem:[#allocation8 + $0x20] sm:$0xf]
        %v668 = vld [vmem:[#allocation8 + $0x24] sm:$0xf]
        %v669 = vld [vmem:[#allocation8 + $0x28] sm:$0xf]
        %v670 = vld [vmem:[#allocation8 + $0x2c] sm:$0xf]
        %v671 = vld [vmem:[#allocation8 + $0x30] sm:$0xf]
        %v672 = vld [vmem:[#allocation8 + $0x34] sm:$0xf]
        %v673 = vld [vmem:[#allocation8 + $0x38] sm:$0xf]
        %v674 = vld [vmem:[#allocation8 + $0x3c] sm:$0xf]
        %v675 = vld [vmem:[%s7] sm:$0x1]
        %v677 = vperm.slane %v675, 0
        %v695 = vunpack.c.l.b16 %v659
        %v696 = vunpack.c.l.b16 %v660
        %v697 = vunpack.c.l.b16 %v661
        %v698 = vunpack.c.l.b16 %v662
        %v699 = vunpack.c.l.b16 %v663
        %v700 = vunpack.c.l.b16 %v664
        %v701 = vunpack.c.l.b16 %v665
        %v702 = vunpack.c.l.b16 %v666
        %v703 = vunpack.c.l.b16 %v667
        %v704 = vunpack.c.l.b16 %v668
        %v705 = vunpack.c.l.b16 %v669
        %v706 = vunpack.c.l.b16 %v670
        %v707 = vunpack.c.l.b16 %v671
        %v708 = vunpack.c.l.b16 %v672
        %v709 = vunpack.c.l.b16 %v673
        %v710 = vunpack.c.l.b16 %v674
        %v711 = vpack.c.b16 %v696, %v695
        %v712 = vpack.c.b16 %v698, %v697
        %v713 = vpack.c.b16 %v700, %v699
        %v714 = vpack.c.b16 %v702, %v701
        %v715 = vpack.c.b16 %v704, %v703
        %v716 = vpack.c.b16 %v706, %v705
        %v717 = vpack.c.b16 %v708, %v707
        %v718 = vpack.c.b16 %v710, %v709
        %727 = vmatpush.bf16.msra.mxu0 %v718
        %728 = vmatpush.bf16.msra.mxu0 %v717
        %729 = vmatpush.bf16.msra.mxu0 %v716
        %730 = vmatpush.bf16.msra.mxu0 %v715
        %731 = vmatpush.bf16.msra.mxu0 %v714
        %732 = vmatpush.bf16.msra.mxu0 %v713
        %733 = vmatpush.bf16.msra.mxu0 %v712
        %734 = vmatpush.bf16.msra.mxu0 %v711
        %735 = vmatmul.bf16.gmra.mxu0 %v576
        %v736 = vpop.f32.mrf.mxu0
        %v737 = vadd.f32 %v677, %v736
        %v738 = vpop.f32.mrf.mxu0
        %v739 = vadd.f32 %v677, %v738
        %740 = vdwg.mxu0
        %v741 = vld [vmem:[#allocation10] sm:$0xf]
        %v742 = vld [vmem:[#allocation10 + $0x4] sm:$0xf]
        %v743 = vld [vmem:[#allocation10 + $0x8] sm:$0xf]
        %v744 = vld [vmem:[#allocation10 + $0xc] sm:$0xf]
        %v745 = vld [vmem:[#allocation10 + $0x10] sm:$0xf]
        %v746 = vld [vmem:[#allocation10 + $0x14] sm:$0xf]
        %v747 = vld [vmem:[#allocation10 + $0x18] sm:$0xf]
        %v748 = vld [vmem:[#allocation10 + $0x1c] sm:$0xf]
        %v749 = vld [vmem:[#allocation10 + $0x20] sm:$0xf]
        %v750 = vld [vmem:[#allocation10 + $0x24] sm:$0xf]
        %v751 = vld [vmem:[#allocation10 + $0x28] sm:$0xf]
        %v752 = vld [vmem:[#allocation10 + $0x2c] sm:$0xf]
        %v753 = vld [vmem:[#allocation10 + $0x30] sm:$0xf]
        %v754 = vld [vmem:[#allocation10 + $0x34] sm:$0xf]
        %v755 = vld [vmem:[#allocation10 + $0x38] sm:$0xf]
        %v756 = vld [vmem:[#allocation10 + $0x3c] sm:$0xf]
        %v757 = vld [vmem:[%s8] sm:$0x1]
        %v759 = vperm.slane %v757, 0
        %v777 = vunpack.c.l.b16 %v741
        %v778 = vunpack.c.l.b16 %v742
        %v779 = vunpack.c.l.b16 %v743
        %v780 = vunpack.c.l.b16 %v744
        %v781 = vunpack.c.l.b16 %v745
        %v782 = vunpack.c.l.b16 %v746
        %v783 = vunpack.c.l.b16 %v747
        %v784 = vunpack.c.l.b16 %v748
        %v785 = vunpack.c.l.b16 %v749
        %v786 = vunpack.c.l.b16 %v750
        %v787 = vunpack.c.l.b16 %v751
        %v788 = vunpack.c.l.b16 %v752
        %v789 = vunpack.c.l.b16 %v753
        %v790 = vunpack.c.l.b16 %v754
        %v791 = vunpack.c.l.b16 %v755
        %v792 = vunpack.c.l.b16 %v756
        %v793 = vpack.c.b16 %v778, %v777
        %v794 = vpack.c.b16 %v780, %v779
        %v795 = vpack.c.b16 %v782, %v781
        %v796 = vpack.c.b16 %v784, %v783
        %v797 = vpack.c.b16 %v786, %v785
        %v798 = vpack.c.b16 %v788, %v787
        %v799 = vpack.c.b16 %v790, %v789
        %v800 = vpack.c.b16 %v792, %v791
        %809 = vmatpush.bf16.msra.mxu0 %v800
        %810 = vmatpush.bf16.msra.mxu0 %v799
        %811 = vmatpush.bf16.msra.mxu0 %v798
        %812 = vmatpush.bf16.msra.mxu0 %v797
        %813 = vmatpush.bf16.msra.mxu0 %v796
        %814 = vmatpush.bf16.msra.mxu0 %v795
        %815 = vmatpush.bf16.msra.mxu0 %v794
        %816 = vmatpush.bf16.msra.mxu0 %v793
        %817 = vmatmul.bf16.gmra.mxu0 %v576
        %v818 = vpop.f32.mrf.mxu0
        %v819 = vadd.f32 %v759, %v818
        %v820 = vpop.f32.mrf.mxu0
        %v821 = vadd.f32 %v759, %v820
        %822 = vdwg.mxu0
        %v823 = vmul.f32 %v655, 0.17677669
        %v824 = vmul.f32 %v657, 0.17677669
        %v825 = vpack.c.bf16 %v823, %v823
        %v826 = vpack.c.bf16 %v824, %v824
        %827 = vst [vmem:[%s496] sm:$0xf] %v825
        %828 = vst [vmem:[%s496 + $0x4] sm:$0xf] %v826
        %v829 = vpack.c.bf16 %v737, %v737
        %v830 = vpack.c.bf16 %v739, %v739
        %831 = vst [vmem:[%s503] sm:$0xf] %v829
        %832 = vst [vmem:[%s503 + $0x4] sm:$0xf] %v830
        %v833 = vpack.c.bf16 %v819, %v819
        %v834 = vpack.c.bf16 %v821, %v821
        %835 = vst [vmem:[%s510] sm:$0xf] %v833
        %836 = vst [vmem:[%s510 + $0x4] sm:$0xf] %v834
        %s837 = sand.u32 %s252, 1
        %s838 = scalar_lea.sflag [#allocation4], %s837
        %s839 = sand.u32 %s252, 1
        %s840 = smul.addr %s839, 8
        %s841 = scalar_lea.vmem [#allocation11], %s840
        %s842 = sand.u32 %s34, 1
        %s843 = scalar_lea.sflag [#allocation13], %s842
        %s844 = sand.u32 %s280, 1
        %s845 = smul.addr %s844, 8
        %s846 = scalar_lea.vmem [#allocation12], %s845
        %s847 = sand.u32 %s34, 1
        %s848 = scalar_lea.sflag [#allocation13], %s847
        %s849 = sand.u32 %s308, 1
        %s850 = smul.addr %s849, 8
        %s851 = scalar_lea.vmem [#allocation14], %s850
        // Predicated region
        $region77: #{tpu_custom_call.1} parent=55 // pred_check
          %p852 = pneg %p262
        $region78: #{tpu_custom_call.1} parent=55 // pred_check_branch
          %854 = sbr.rel (%p852) target = $region80
        $region79: #{tpu_custom_call.1} parent=55 // pred_region
          %s855 = smul.u32 2, %s39
          %857 = vsyncadd %s838, 0
          %s858 = smul.addr %s38, 2
          %s859 = sadd.s32 %s855, %s858
          %s860 = smul.addr %s859, 4
          %s861 = scalar_lea.hbm %s9, %s860
          %s862 = sshll.u32 %s841, 4
          %s863 = int_to_ptr.vmem [resolvable:$true] %s862
          %s864 = sshll.u32 %s861, 4
          %s865 = int_to_ptr.hbm [resolvable:$true] %s864
          %870 = dma.vmem_to_hbm [thread:$0]  %s863, 128, %s865, %s838, 64, 64, 4
        $region80: #{tpu_custom_call.1} parent=55 // pred_fallthru
          _
        // Predicated region
        $region81: #{tpu_custom_call.1} parent=55 // pred_check
          %p871 = pneg %p290
        $region82: #{tpu_custom_call.1} parent=55 // pred_check_branch
          %873 = sbr.rel (%p871) target = $region84
        $region83: #{tpu_custom_call.1} parent=55 // pred_region
          %s874 = smul.u32 2, %s39
          %876 = vsyncadd %s843, 0
          %s877 = smul.addr %s38, 2
          %s878 = sadd.s32 %s874, %s877
          %s879 = smul.addr %s878, 4
          %s880 = scalar_lea.hbm %s10, %s879
          %s881 = sshll.u32 %s846, 4
          %s882 = int_to_ptr.vmem [resolvable:$true] %s881
          %s883 = sshll.u32 %s880, 4
          %s884 = int_to_ptr.hbm [resolvable:$true] %s883
          %889 = dma.vmem_to_hbm [thread:$0]  %s882, 128, %s884, %s843, 64, 64, 4
        $region84: #{tpu_custom_call.1} parent=55 // pred_fallthru
          _
        // Predicated region
        $region85: #{tpu_custom_call.1} parent=55 // pred_check
          %p890 = pneg %p318
        $region86: #{tpu_custom_call.1} parent=55 // pred_check_branch
          %892 = sbr.rel (%p890) target = $region88
        $region87: #{tpu_custom_call.1} parent=55 // pred_region
          %s893 = smul.u32 2, %s39
          %895 = vsyncadd %s848, 0
          %s896 = smul.addr %s38, 2
          %s897 = sadd.s32 %s893, %s896
          %s898 = smul.addr %s897, 4
          %s899 = scalar_lea.hbm %s11, %s898
          %s900 = sshll.u32 %s851, 4
          %s901 = int_to_ptr.vmem [resolvable:$true] %s900
          %s902 = sshll.u32 %s899, 4
          %s903 = int_to_ptr.hbm [resolvable:$true] %s902
          %908 = dma.vmem_to_hbm [thread:$0]  %s901, 128, %s903, %s848, 64, 64, 4
        $region88: #{tpu_custom_call.1} parent=55 // pred_fallthru
          _
      $region56: #{tpu_custom_call.1} parent=5 // pred_fallthru
        _
      %p909 = scmp.le.s32.totalorder 2, %s29
      // Predicated region
      $region89: #{tpu_custom_call.1} parent=5 // pred_check
        %p910 = pneg %p909
      $region90: #{tpu_custom_call.1} parent=5 // pred_check_branch
        %912 = sbr.rel (%p910) target = $region92
      $region91: #{tpu_custom_call.1} parent=5 // pred_region
        %s913 = ssub.s32 %s29, 2
        // Predicated region
        $region93: #{tpu_custom_call.1} parent=91 // pred_check
          %p914 = pneg %p268
        $region94: #{tpu_custom_call.1} parent=91 // pred_check_branch
          %916 = sbr.rel (%p914) target = $region96
        $region95: #{tpu_custom_call.1} parent=91 // pred_region
          %s917 = sand.u32 %s253, 1
          %s918 = scalar_lea.sflag [#allocation4], %s917
          %s919 = sand.u32 %s253, 1
          %s920 = smul.addr %s919, 8
          %s921 = scalar_lea.vmem [#allocation11], %s920
          %923 = dma.done %s918, 128
        $region96: #{tpu_custom_call.1} parent=91 // pred_fallthru
          _
        // Predicated region
        $region97: #{tpu_custom_call.1} parent=91 // pred_check
          %p924 = pneg %p296
        $region98: #{tpu_custom_call.1} parent=91 // pred_check_branch
          %926 = sbr.rel (%p924) target = $region100
        $region99: #{tpu_custom_call.1} parent=91 // pred_region
          %s927 = sand.u32 %s35, 1
          %s928 = scalar_lea.sflag [#allocation13], %s927
          %s929 = sand.u32 %s281, 1
          %s930 = smul.addr %s929, 8
          %s931 = scalar_lea.vmem [#allocation12], %s930
          %933 = dma.done %s928, 128
        $region100: #{tpu_custom_call.1} parent=91 // pred_fallthru
          _
        // Predicated region
        $region101: #{tpu_custom_call.1} parent=91 // pred_check
          %p934 = pneg %p324
        $region102: #{tpu_custom_call.1} parent=91 // pred_check_branch
          %936 = sbr.rel (%p934) target = $region104
        $region103: #{tpu_custom_call.1} parent=91 // pred_region
          %s937 = sand.u32 %s35, 1
          %s938 = scalar_lea.sflag [#allocation13], %s937
          %s939 = sand.u32 %s309, 1
          %s940 = smul.addr %s939, 8
          %s941 = scalar_lea.vmem [#allocation14], %s940
          %943 = dma.done %s938, 128
        $region104: #{tpu_custom_call.1} parent=91 // pred_fallthru
          _
      $region92: #{tpu_custom_call.1} parent=5 // pred_fallthru
        _
    $region6: #{tpu_custom_call.1} parent=1 // loop_footer
      %s33 = sadd.s32 1, %s29
    $region7: #{tpu_custom_call.1} parent=1 // loop_footer_branch
      %28 = sbr.rel target = $region3
    $region8: #{tpu_custom_call.1} parent=1 // loop_exit
      _
    %944 = vsyncpa [#allocation3], 1
    %s945 = scalar_lea.sflag [#allocation3], 1
    %946 = vsyncpa %s945, 1
    %947 = vsyncpa [#allocation6], 1
    %948 = vsyncpa [#allocation9], 1
    %949 = vsyncpa [#allocation4], 1
    %s950 = scalar_lea.sflag [#allocation4], 1
    %951 = vsyncpa %s950, 1
    %952 = vsyncpa [#allocation13], 1
    %s953 = scalar_lea.sflag [#allocation13], 1
    %954 = vsyncpa %s953, 1

</llo_original>
